<compile_context>
chip_gen: v7x
topology: tpu7x:2x2x1
jax: 0.10.0
libtpu: 0.0.40
codegen_flags: <defaults>
</compile_context>

<pallas_src>
import math
import functools

import jax
import jax.numpy as jnp
from jax.experimental import pallas as pl
from jax.experimental.pallas import tpu as pltpu


def _mha_kernel(n_heads, head_dim, compute_dtype, exp_dtype, return_attn,
                q_ref, k_ref, v_ref, mask_ref,
                wq_ref, bq_ref, wk_ref, bk_ref,
                wv_ref, bv_ref, wo_ref, bo_ref,
                *out_refs):
    if return_attn:
        out_ref, attn_ref = out_refs
    else:
        (out_ref,) = out_refs
        attn_ref = None

    tq = q_ref.shape[1]
    S_k = k_ref.shape[1]
    cd = compute_dtype
    low_precision = jnp.dtype(cd) != jnp.dtype(jnp.float32)

    # ---- fused H-wide projections: one lane-dense MXU matmul each ---------
    # wq/bq are pre-scaled by 1/sqrt(head_dim) on the host, so no in-kernel
    # score scaling is needed.
    x_q = q_ref[0].astype(cd)                                  # (tq,  H)
    x_k = k_ref[0].astype(cd)                                  # (S_k, H)
    x_v = v_ref[0].astype(cd)                                  # (S_k, H)

    Q = jnp.dot(x_q, wq_ref[...].astype(cd),
                preferred_element_type=jnp.float32) + bq_ref[...]   # (tq, H)
    K = jnp.dot(x_k, wk_ref[...].astype(cd),
                preferred_element_type=jnp.float32) + bk_ref[...]   # (S_k, H)
    V = jnp.dot(x_v, wv_ref[...].astype(cd),
                preferred_element_type=jnp.float32) + bv_ref[...]   # (S_k, H)

    # Single cast per tensor, fused with the head-split relayout (O(S*H),
    # cheap relative to the O(S_q*S_k) attention work).
    Qh = Q.astype(cd).reshape(tq, n_heads, head_dim).transpose(1, 0, 2)    # (nh,tq,hd)
    Kh = K.astype(cd).reshape(S_k, n_heads, head_dim).transpose(1, 0, 2)   # (nh,Sk,hd)
    Vh = V.astype(cd).reshape(S_k, n_heads, head_dim).transpose(1, 0, 2)   # (nh,Sk,hd)

    # Additive mask bias, computed once per grid step and broadcast over
    # heads and queries (equivalent to masked_fill(-1e10) for rows with at
    # least one unmasked key, same as the reference usage).
    bias = jnp.where(mask_ref[0] == 0,
                     jnp.float32(-1e10), jnp.float32(0.0))            # (1, S_k)

    # ---- attention scores + numerically stable softmax --------------------
    scores = jnp.einsum("hqd,hkd->hqk", Qh, Kh,
                        preferred_element_type=jnp.float32)           # (nh,tq,Sk)
    scores = scores + bias[None, :, :]

    m = jnp.max(scores, axis=-1, keepdims=True)                       # f32
    # exp in exp_dtype (bf16 on v6e/v7x fast path -> EUP slot relief and half
    # the vreg traffic for `e`); denominator accumulated in f32.
    e = jnp.exp((scores - m).astype(exp_dtype))                       # (nh,tq,Sk)
    denom = jnp.sum(e, axis=-1, keepdims=True, dtype=jnp.float32)     # (nh,tq,1)
    inv = pl.reciprocal(denom, approx=low_precision)                  # f32

    if attn_ref is not None:
        attn_ref[0] = (e.astype(jnp.float32) * inv).astype(attn_ref.dtype)

    # TODO(synk): nn.Dropout on the attention probabilities is identity here
    # (eval mode / dropout=0.0); stochastic dropout is not implemented.

    # Unnormalized PV matmul, then rescale the (much smaller) context tensor.
    ctx = jnp.einsum("hqk,hkd->hqd", e.astype(cd), Vh,
                     preferred_element_type=jnp.float32)              # (nh,tq,hd)
    ctx = ctx * inv

    # ---- output projection: single H-wide matmul ---------------------------
    # Head concatenation order matches PyTorch's permute+view (column index
    # h*head_dim + d), so the head reduction happens on the MXU K-dim.
    ctx_flat = ctx.transpose(1, 0, 2).reshape(tq, n_heads * head_dim)
    out = jnp.dot(ctx_flat.astype(cd), wo_ref[...].astype(cd),
                  preferred_element_type=jnp.float32) + bo_ref[...]   # (tq, H)
    out_ref[0] = out.astype(out_ref.dtype)


def _pick_q_tile(S_q, per_row_bytes, fixed_bytes, budget_bytes):
    """Largest S_q tile (divisor of S_q, multiple of 8) fitting the budget."""
    if fixed_bytes + S_q * per_row_bytes <= budget_bytes:
        return S_q
    for t in (1024, 512, 256, 128, 64, 32, 16, 8):
        if t < S_q and S_q % t == 0 and fixed_bytes + t * per_row_bytes <= budget_bytes:
            return t
    for t in (8, 16, 32, 64, 128):          # fallback: smallest clean tile
        if t < S_q and S_q % t == 0:
            return t
    return S_q


def multi_head_attention(query, key, value, mask, params, n_heads, *,
                         compute_dtype=jnp.bfloat16,
                         return_attention=False,
                         q_tile=None,
                         vmem_budget_bytes=24 * 1024 * 1024):
    """query/key/value: (B, S, H) f32; mask: (B, S_k) int (1=attend, 0=mask).

    params holds PyTorch-convention Linear weights: w* are (out, in), b* are (1, H).
    """
    B, S_q, H = query.shape
    S_k = key.shape[1]
    assert H % n_heads == 0
    head_dim = H // n_heads

    # Host-side (free) weight re-layout: keep each Linear as a plain
    # (H_in, H_out) matrix so every in-kernel matmul is x @ W (no transposes,
    # no per-head slicing).  1/sqrt(head_dim) is folded into fc_q.
    inv_scale = jnp.float32(1.0 / math.sqrt(head_dim))
    wq_h = params["wq"].T * inv_scale
    bq_h = params["bq"] * inv_scale                      # (1, H)
    wk_h, bk_h = params["wk"].T, params["bk"]
    wv_h, bv_h = params["wv"].T, params["bv"]
    wo_h, bo_h = params["wo"].T, params["bo"]            # rows: h*head_dim + d

    mask3 = mask.reshape(B, 1, S_k).astype(jnp.int32)

    is_f32 = jnp.dtype(compute_dtype) == jnp.dtype(jnp.float32)
    attn_dtype = jnp.float32 if is_f32 else jnp.bfloat16

    # bf16 exp only where the EUP supports it (v6e / v7x); f32 elsewhere.
    if is_f32:
        exp_dtype = jnp.float32
    else:
        kind = jax.devices()[0].device_kind.lower()
        exp_dtype = jnp.bfloat16 if ("v6" in kind or "v7" in kind) else jnp.float32

    cd_bytes = jnp.dtype(compute_dtype).itemsize
    exp_bytes = jnp.dtype(exp_dtype).itemsize
    attn_bytes = jnp.dtype(attn_dtype).itemsize if return_attention else 0

    # VMEM budgeting: per-q-row terms (f32 scores + e + double-buffered attn
    # writeback + small per-row tensors) and tq-independent residents
    # (K/V blocks, their cd copies, weights).
    per_row = n_heads * S_k * (4 + exp_bytes + 2 * attn_bytes) + 8 * H * 4
    fixed = 4 * S_k * H * 4 + 2 * S_k * H * cd_bytes + 4 * H * H * 4
    tq = q_tile if q_tile is not None else _pick_q_tile(
        S_q, per_row, fixed, vmem_budget_bytes)
    assert S_q % tq == 0 and (tq == S_q or tq % 8 == 0)
    nq = S_q // tq

    est_vmem = fixed + tq * per_row
    vmem_limit = None
    if est_vmem > 28 * 1024 * 1024:
        # Explicit budget with headroom, kept under v7x's 64 MiB physical VMEM.
        vmem_limit = int(min(est_vmem * 3 // 2, 60 * 1024 * 1024))

    kernel = functools.partial(_mha_kernel, n_heads, head_dim,
                               compute_dtype, exp_dtype, return_attention)

    q_spec = pl.BlockSpec((1, tq, H), lambda b, qi: (b, qi, 0))
    # K/V/mask constant along the S_q-tile axis -> stay VMEM-resident.
    kv_spec = pl.BlockSpec((1, S_k, H), lambda b, qi: (b, 0, 0))
    mask_spec = pl.BlockSpec((1, 1, S_k), lambda b, qi: (b, 0, 0))
    # Constant index_maps -> weights are not re-DMA'd across grid steps.
    w_spec = pl.BlockSpec((H, H), lambda b, qi: (0, 0))
    b_spec = pl.BlockSpec((1, H), lambda b, qi: (0, 0))

    out_shapes = [jax.ShapeDtypeStruct((B, S_q, H), query.dtype)]
    out_specs = [pl.BlockSpec((1, tq, H), lambda b, qi: (b, qi, 0))]
    if return_attention:
        out_shapes.append(jax.ShapeDtypeStruct((B, n_heads, S_q, S_k), attn_dtype))
        out_specs.append(
            pl.BlockSpec((1, n_heads, tq, S_k), lambda b, qi: (b, 0, qi, 0)))

    results = pl.pallas_call(
        kernel,
        out_shape=tuple(out_shapes),
        grid_spec=pltpu.PrefetchScalarGridSpec(
            num_scalar_prefetch=0,
            grid=(B, nq),
            in_specs=[q_spec, kv_spec, kv_spec, mask_spec,
                      w_spec, b_spec,      # fc_q (pre-scaled by 1/sqrt(hd))
                      w_spec, b_spec,      # fc_k
                      w_spec, b_spec,      # fc_v
                      w_spec, b_spec],     # fc_o
            out_specs=out_specs,
        ),
        compiler_params=pltpu.CompilerParams(
            dimension_semantics=("parallel", "parallel"),
            vmem_limit_bytes=vmem_limit),
    )(query, key, value, mask3,
      wq_h, bq_h, wk_h, bk_h, wv_h, bv_h, wo_h, bo_h)

    if return_attention:
        out, attn = results
        return out, attn
    (out,) = results
    return out


def _reference(query, key, value, mask, params, n_heads):
    """Pure-JAX reference mirroring the PyTorch forward."""
    B, S_q, H = query.shape
    S_k = key.shape[1]
    hd = H // n_heads

    def lin(x, w, b):
        return x @ w.T + b[0]

    Q = lin(query, params["wq"], params["bq"]).reshape(B, S_q, n_heads, hd).transpose(0, 2, 1, 3)
    K = lin(key, params["wk"], params["bk"]).reshape(B, S_k, n_heads, hd).transpose(0, 2, 1, 3)
    V = lin(value, params["wv"], params["bv"]).reshape(B, S_k, n_heads, hd).transpose(0, 2, 1, 3)

    scores = jnp.einsum("bhqd,bhkd->bhqk", Q, K) / jnp.sqrt(jnp.float32(hd))
    m = mask[:, None, None, :]
    scores = jnp.where(m == 0, -1e10, scores)
    attn = jax.nn.softmax(scores, axis=-1)
    x = jnp.einsum("bhqk,bhkd->bhqd", attn, V)
    x = x.transpose(0, 2, 1, 3).reshape(B, S_q, H)
    out = x @ params["wo"].T + params["bo"][0]
    return out, attn


if __name__ == "__main__":
    # Small shapes consistent with the module's forward.
    B, S, H, n_heads = 2, 8, 32, 4

    key0 = jax.random.PRNGKey(0)
    keys = jax.random.split(key0, 12)

    def init_linear(kw, kb, fan_in):
        bound = 1.0 / math.sqrt(fan_in)
        w = jax.random.uniform(kw, (H, H), jnp.float32, -bound, bound)
        b = jax.random.uniform(kb, (1, H), jnp.float32, -bound, bound)
        return w, b

    wq, bq = init_linear(keys[0], keys[1], H)
    wk, bk = init_linear(keys[2], keys[3], H)
    wv, bv = init_linear(keys[4], keys[5], H)
    wo, bo = init_linear(keys[6], keys[7], H)
    params = dict(wq=wq, bq=bq, wk=wk, bk=bk, wv=wv, bv=bv, wo=wo, bo=bo)

    query = jax.random.normal(keys[8], (B, S, H), jnp.float32)
    key_t = jax.random.normal(keys[9], (B, S, H), jnp.float32)
    value = jax.random.normal(keys[10], (B, S, H), jnp.float32)
    # mask: 1 = attend, 0 = masked out (last two key positions of batch 1 masked)
    mask = jnp.ones((B, S), jnp.int32).at[1, -2:].set(0)

    ref_out, ref_attn = _reference(query, key_t, value, mask, params, n_heads)

    # 1) Exact f32 path with attention probabilities (matches the PyTorch module).
    out, attn = multi_head_attention(query, key_t, value, mask, params, n_heads,
                                     compute_dtype=jnp.float32,
                                     return_attention=True)
    out = jax.block_until_ready(out)
    attn = jax.block_until_ready(attn)
    assert jnp.allclose(out, ref_out, atol=1e-4, rtol=1e-4), "output mismatch"
    assert jnp.allclose(attn, ref_attn, atol=1e-5, rtol=1e-4), "attention mismatch"

    # 2) Default fast path: bf16 MXU operands (f32 accumulation / softmax
    #    stats), no attention-probs HBM writeback.
    out_fast = multi_head_attention(query, key_t, value, mask, params, n_heads)
    out_fast = jax.block_until_ready(out_fast)
    assert jnp.allclose(out_fast, ref_out, atol=5e-2, rtol=5e-2), "bf16 output mismatch"

    print("KERNEL_OK")
</pallas_src>

<mosaic_0001>
module attributes {stable_mosaic.version = 11 : i64} {
  func.func @_mha_kernel(%arg0: i32, %arg1: i32, %arg2: memref<1x8x32xf32, #tpu.memory_space<vmem>>, %arg3: memref<1x8x32xf32, #tpu.memory_space<vmem>>, %arg4: memref<1x8x32xf32, #tpu.memory_space<vmem>>, %arg5: memref<1x1x8xi32, #tpu.memory_space<vmem>>, %arg6: memref<32x32xf32, #tpu.memory_space<vmem>>, %arg7: memref<1x32xf32, #tpu.memory_space<vmem>>, %arg8: memref<32x32xf32, #tpu.memory_space<vmem>>, %arg9: memref<1x32xf32, #tpu.memory_space<vmem>>, %arg10: memref<32x32xf32, #tpu.memory_space<vmem>>, %arg11: memref<1x32xf32, #tpu.memory_space<vmem>>, %arg12: memref<32x32xf32, #tpu.memory_space<vmem>>, %arg13: memref<1x32xf32, #tpu.memory_space<vmem>>, %arg14: memref<1x8x32xf32, #tpu.memory_space<vmem>>, %arg15: memref<1x4x8x8xf32, #tpu.memory_space<vmem>>) attributes {dimension_semantics = [#tpu.dimension_semantics<parallel>, #tpu.dimension_semantics<parallel>], iteration_bounds = array<i64: 2, 1>, scalar_prefetch = 0 : i64, scratch_operands = 0 : i64, tpu.core_type = #tpu.core_type<tc>, window_params = [{transform_indices = @transform_0, window_bounds = array<i64: 1, 8, 32>}, {transform_indices = @transform_1, window_bounds = array<i64: 1, 8, 32>}, {transform_indices = @transform_2, window_bounds = array<i64: 1, 8, 32>}, {transform_indices = @transform_3, window_bounds = array<i64: 1, 1, 8>}, {pipeline_mode = #tpu.pipeline_mode<synchronous>, transform_indices = @transform_4, window_bounds = array<i64: 32, 32>}, {pipeline_mode = #tpu.pipeline_mode<synchronous>, transform_indices = @transform_5, window_bounds = array<i64: 1, 32>}, {pipeline_mode = #tpu.pipeline_mode<synchronous>, transform_indices = @transform_6, window_bounds = array<i64: 32, 32>}, {pipeline_mode = #tpu.pipeline_mode<synchronous>, transform_indices = @transform_7, window_bounds = array<i64: 1, 32>}, {pipeline_mode = #tpu.pipeline_mode<synchronous>, transform_indices = @transform_8, window_bounds = array<i64: 32, 32>}, {pipeline_mode = #tpu.pipeline_mode<synchronous>, transform_indices = @transform_9, window_bounds = array<i64: 1, 32>}, {pipeline_mode = #tpu.pipeline_mode<synchronous>, transform_indices = @transform_10, window_bounds = array<i64: 32, 32>}, {pipeline_mode = #tpu.pipeline_mode<synchronous>, transform_indices = @transform_11, window_bounds = array<i64: 1, 32>}, {transform_indices = @transform_12, window_bounds = array<i64: 1, 8, 32>}, {transform_indices = @transform_13, window_bounds = array<i64: 1, 4, 8, 8>}]} {
    %c0 = arith.constant 0 : index
    %c0_0 = arith.constant 0 : index
    %c0_1 = arith.constant 0 : index
    %0 = vector.load %arg2[%c0, %c0_0, %c0_1] : memref<1x8x32xf32, #tpu.memory_space<vmem>>, vector<1x8x32xf32>
    %1 = vector.shape_cast %0 : vector<1x8x32xf32> to vector<8x32xf32>
    %c0_2 = arith.constant 0 : index
    %c0_3 = arith.constant 0 : index
    %c0_4 = arith.constant 0 : index
    %2 = vector.load %arg3[%c0_2, %c0_3, %c0_4] : memref<1x8x32xf32, #tpu.memory_space<vmem>>, vector<1x8x32xf32>
    %3 = vector.shape_cast %2 : vector<1x8x32xf32> to vector<8x32xf32>
    %c0_5 = arith.constant 0 : index
    %c0_6 = arith.constant 0 : index
    %c0_7 = arith.constant 0 : index
    %4 = vector.load %arg4[%c0_5, %c0_6, %c0_7] : memref<1x8x32xf32, #tpu.memory_space<vmem>>, vector<1x8x32xf32>
    %5 = vector.shape_cast %4 : vector<1x8x32xf32> to vector<8x32xf32>
    %c0_8 = arith.constant 0 : index
    %c0_9 = arith.constant 0 : index
    %6 = vector.load %arg6[%c0_8, %c0_9] : memref<32x32xf32, #tpu.memory_space<vmem>>, vector<32x32xf32>
    %cst = arith.constant dense<0.000000e+00> : vector<8x32xf32>
    %7 = tpu.matmul %1, %6, %cst {dimension_numbers = #tpu.dot_dimension_numbers<[1], [0], [0], [1], [0, 0, 1, 1], [], []>} : vector<8x32xf32>, vector<32x32xf32>, vector<8x32xf32> -> vector<8x32xf32>
    %c0_10 = arith.constant 0 : index
    %c0_11 = arith.constant 0 : index
    %8 = vector.load %arg7[%c0_10, %c0_11] : memref<1x32xf32, #tpu.memory_space<vmem>>, vector<1x32xf32>
    %9 = vector.broadcast %8 : vector<1x32xf32> to vector<8x32xf32>
    %10 = arith.addf %7, %9 : vector<8x32xf32>
    %c0_12 = arith.constant 0 : index
    %c0_13 = arith.constant 0 : index
    %11 = vector.load %arg8[%c0_12, %c0_13] : memref<32x32xf32, #tpu.memory_space<vmem>>, vector<32x32xf32>
    %cst_14 = arith.constant dense<0.000000e+00> : vector<8x32xf32>
    %12 = tpu.matmul %3, %11, %cst_14 {dimension_numbers = #tpu.dot_dimension_numbers<[1], [0], [0], [1], [0, 0, 1, 1], [], []>} : vector<8x32xf32>, vector<32x32xf32>, vector<8x32xf32> -> vector<8x32xf32>
    %c0_15 = arith.constant 0 : index
    %c0_16 = arith.constant 0 : index
    %13 = vector.load %arg9[%c0_15, %c0_16] : memref<1x32xf32, #tpu.memory_space<vmem>>, vector<1x32xf32>
    %14 = vector.broadcast %13 : vector<1x32xf32> to vector<8x32xf32>
    %15 = arith.addf %12, %14 : vector<8x32xf32>
    %c0_17 = arith.constant 0 : index
    %c0_18 = arith.constant 0 : index
    %16 = vector.load %arg10[%c0_17, %c0_18] : memref<32x32xf32, #tpu.memory_space<vmem>>, vector<32x32xf32>
    %cst_19 = arith.constant dense<0.000000e+00> : vector<8x32xf32>
    %17 = tpu.matmul %5, %16, %cst_19 {dimension_numbers = #tpu.dot_dimension_numbers<[1], [0], [0], [1], [0, 0, 1, 1], [], []>} : vector<8x32xf32>, vector<32x32xf32>, vector<8x32xf32> -> vector<8x32xf32>
    %c0_20 = arith.constant 0 : index
    %c0_21 = arith.constant 0 : index
    %18 = vector.load %arg11[%c0_20, %c0_21] : memref<1x32xf32, #tpu.memory_space<vmem>>, vector<1x32xf32>
    %19 = vector.broadcast %18 : vector<1x32xf32> to vector<8x32xf32>
    %20 = arith.addf %17, %19 : vector<8x32xf32>
    %21 = vector.shape_cast %10 : vector<8x32xf32> to vector<8x4x8xf32>
    %22 = tpu.transpose %21, [1, 0, 2] : vector<8x4x8xf32> -> vector<4x8x8xf32>
    %23 = vector.shape_cast %15 : vector<8x32xf32> to vector<8x4x8xf32>
    %24 = tpu.transpose %23, [1, 0, 2] : vector<8x4x8xf32> -> vector<4x8x8xf32>
    %25 = vector.shape_cast %20 : vector<8x32xf32> to vector<8x4x8xf32>
    %26 = tpu.transpose %25, [1, 0, 2] : vector<8x4x8xf32> -> vector<4x8x8xf32>
    %c0_22 = arith.constant 0 : index
    %c0_23 = arith.constant 0 : index
    %c0_24 = arith.constant 0 : index
    %27 = vector.load %arg5[%c0_22, %c0_23, %c0_24] : memref<1x1x8xi32, #tpu.memory_space<vmem>>, vector<1x1x8xi32>
    %28 = vector.shape_cast %27 : vector<1x1x8xi32> to vector<1x8xi32>
    %c0_i32 = arith.constant 0 : i32
    %29 = vector.broadcast %c0_i32 : i32 to vector<1x8xi32>
    %30 = arith.cmpi eq, %28, %29 : vector<1x8xi32>
    %cst_25 = arith.constant -1.000000e+10 : f32
    %cst_26 = arith.constant 0.000000e+00 : f32
    %31 = vector.broadcast %cst_25 : f32 to vector<1x8xf32>
    %32 = vector.broadcast %cst_26 : f32 to vector<1x8xf32>
    %33 = arith.select %30, %31, %32 : vector<1x8xi1>, vector<1x8xf32>
    "tpu.trace_start"() <{level = 10 : i32, message = "hqd,hkd->hqk"}> : () -> ()
    %cst_27 = arith.constant dense<0.000000e+00> : vector<4x8x8xf32>
    %34 = tpu.matmul %22, %24, %cst_27 {dimension_numbers = #tpu.dot_dimension_numbers<[2], [2], [1], [1], [0, 0, 0, 1, 1, 1], [0], [0]>} : vector<4x8x8xf32>, vector<4x8x8xf32>, vector<4x8x8xf32> -> vector<4x8x8xf32>
    "tpu.trace_stop"() : () -> ()
    %35 = vector.shape_cast %33 : vector<1x8xf32> to vector<1x1x8xf32>
    %36 = vector.broadcast %35 : vector<1x1x8xf32> to vector<4x8x8xf32>
    %37 = arith.addf %34, %36 : vector<4x8x8xf32>
    %cst_28 = arith.constant dense<0xFF800000> : vector<4x8xf32>
    %38 = vector.multi_reduction <maximumf>, %37, %cst_28 [2] : vector<4x8x8xf32> to vector<4x8xf32>
    %39 = vector.shape_cast %38 : vector<4x8xf32> to vector<4x8x1xf32>
    %40 = vector.broadcast %39 : vector<4x8x1xf32> to vector<4x8x8xf32>
    %41 = arith.subf %37, %40 : vector<4x8x8xf32>
    %42 = math.exp %41 : vector<4x8x8xf32>
    %cst_29 = arith.constant dense<0.000000e+00> : vector<4x8xf32>
    %43 = vector.multi_reduction <add>, %42, %cst_29 [2] : vector<4x8x8xf32> to vector<4x8xf32>
    %44 = vector.shape_cast %43 : vector<4x8xf32> to vector<4x8x1xf32>
    %45 = tpu.reciprocal %44 : vector<4x8x1xf32> -> vector<4x8x1xf32>
    %46 = vector.broadcast %45 : vector<4x8x1xf32> to vector<4x8x8xf32>
    %47 = arith.mulf %42, %46 : vector<4x8x8xf32>
    %c0_30 = arith.constant 0 : index
    %c0_31 = arith.constant 0 : index
    %c0_32 = arith.constant 0 : index
    %c0_33 = arith.constant 0 : index
    %48 = vector.load %arg15[%c0_30, %c0_31, %c0_32, %c0_33] : memref<1x4x8x8xf32, #tpu.memory_space<vmem>>, vector<1x4x8x8xf32>
    %49 = vector.shape_cast %48 : vector<1x4x8x8xf32> to vector<4x8x8xf32>
    %50 = vector.shape_cast %47 : vector<4x8x8xf32> to vector<1x4x8x8xf32>
    tpu.vector_store %arg15[%c0_30, %c0_31, %c0_32, %c0_33], %50 {strides = array<i32>} : memref<1x4x8x8xf32, #tpu.memory_space<vmem>>, vector<1x4x8x8xf32>,
    "tpu.trace_start"() <{level = 10 : i32, message = "hqk,hkd->hqd"}> : () -> ()
    %cst_34 = arith.constant dense<0.000000e+00> : vector<4x8x8xf32>
    %51 = tpu.matmul %42, %26, %cst_34 {dimension_numbers = #tpu.dot_dimension_numbers<[2], [1], [1], [2], [0, 0, 0, 1, 1, 2], [0], [0]>} : vector<4x8x8xf32>, vector<4x8x8xf32>, vector<4x8x8xf32> -> vector<4x8x8xf32>
    "tpu.trace_stop"() : () -> ()
    %52 = vector.broadcast %45 : vector<4x8x1xf32> to vector<4x8x8xf32>
    %53 = arith.mulf %51, %52 : vector<4x8x8xf32>
    %54 = tpu.transpose %53, [1, 0, 2] : vector<4x8x8xf32> -> vector<8x4x8xf32>
    %55 = vector.shape_cast %54 : vector<8x4x8xf32> to vector<8x32xf32>
    %c0_35 = arith.constant 0 : index
    %c0_36 = arith.constant 0 : index
    %56 = vector.load %arg12[%c0_35, %c0_36] : memref<32x32xf32, #tpu.memory_space<vmem>>, vector<32x32xf32>
    %cst_37 = arith.constant dense<0.000000e+00> : vector<8x32xf32>
    %57 = tpu.matmul %55, %56, %cst_37 {dimension_numbers = #tpu.dot_dimension_numbers<[1], [0], [0], [1], [0, 0, 1, 1], [], []>} : vector<8x32xf32>, vector<32x32xf32>, vector<8x32xf32> -> vector<8x32xf32>
    %c0_38 = arith.constant 0 : index
    %c0_39 = arith.constant 0 : index
    %58 = vector.load %arg13[%c0_38, %c0_39] : memref<1x32xf32, #tpu.memory_space<vmem>>, vector<1x32xf32>
    %59 = vector.broadcast %58 : vector<1x32xf32> to vector<8x32xf32>
    %60 = arith.addf %57, %59 : vector<8x32xf32>
    %c0_40 = arith.constant 0 : index
    %c0_41 = arith.constant 0 : index
    %c0_42 = arith.constant 0 : index
    %61 = vector.load %arg14[%c0_40, %c0_41, %c0_42] : memref<1x8x32xf32, #tpu.memory_space<vmem>>, vector<1x8x32xf32>
    %62 = vector.shape_cast %61 : vector<1x8x32xf32> to vector<8x32xf32>
    %63 = vector.shape_cast %60 : vector<8x32xf32> to vector<1x8x32xf32>
    tpu.vector_store %arg14[%c0_40, %c0_41, %c0_42], %63 {strides = array<i32>} : memref<1x8x32xf32, #tpu.memory_space<vmem>>, vector<1x8x32xf32>,
    return
  }
  func.func @transform_0(%arg0: i32, %arg1: i32) -> (i32, i32, i32) {
    %c0_i32 = arith.constant 0 : i32
    %c0_i32_0 = arith.constant 0 : i32
    return %arg0, %arg1, %c0_i32 : i32, i32, i32
  }
  func.func @transform_1(%arg0: i32, %arg1: i32) -> (i32, i32, i32) {
    %c0_i32 = arith.constant 0 : i32
    %c0_i32_0 = arith.constant 0 : i32
    %c0_i32_1 = arith.constant 0 : i32
    return %arg0, %c0_i32, %c0_i32_0 : i32, i32, i32
  }
  func.func @transform_2(%arg0: i32, %arg1: i32) -> (i32, i32, i32) {
    %c0_i32 = arith.constant 0 : i32
    %c0_i32_0 = arith.constant 0 : i32
    %c0_i32_1 = arith.constant 0 : i32
    return %arg0, %c0_i32, %c0_i32_0 : i32, i32, i32
  }
  func.func @transform_3(%arg0: i32, %arg1: i32) -> (i32, i32, i32) {
    %c0_i32 = arith.constant 0 : i32
    %c0_i32_0 = arith.constant 0 : i32
    %c0_i32_1 = arith.constant 0 : i32
    return %arg0, %c0_i32, %c0_i32_0 : i32, i32, i32
  }
  func.func @transform_4(%arg0: i32, %arg1: i32) -> (i32, i32) {
    %c0_i32 = arith.constant 0 : i32
    %c0_i32_0 = arith.constant 0 : i32
    %c0_i32_1 = arith.constant 0 : i32
    return %c0_i32, %c0_i32_0 : i32, i32
  }
  func.func @transform_5(%arg0: i32, %arg1: i32) -> (i32, i32) {
    %c0_i32 = arith.constant 0 : i32
    %c0_i32_0 = arith.constant 0 : i32
    %c0_i32_1 = arith.constant 0 : i32
    return %c0_i32, %c0_i32_0 : i32, i32
  }
  func.func @transform_6(%arg0: i32, %arg1: i32) -> (i32, i32) {
    %c0_i32 = arith.constant 0 : i32
    %c0_i32_0 = arith.constant 0 : i32
    %c0_i32_1 = arith.constant 0 : i32
    return %c0_i32, %c0_i32_0 : i32, i32
  }
  func.func @transform_7(%arg0: i32, %arg1: i32) -> (i32, i32) {
    %c0_i32 = arith.constant 0 : i32
    %c0_i32_0 = arith.constant 0 : i32
    %c0_i32_1 = arith.constant 0 : i32
    return %c0_i32, %c0_i32_0 : i32, i32
  }
  func.func @transform_8(%arg0: i32, %arg1: i32) -> (i32, i32) {
    %c0_i32 = arith.constant 0 : i32
    %c0_i32_0 = arith.constant 0 : i32
    %c0_i32_1 = arith.constant 0 : i32
    return %c0_i32, %c0_i32_0 : i32, i32
  }
  func.func @transform_9(%arg0: i32, %arg1: i32) -> (i32, i32) {
    %c0_i32 = arith.constant 0 : i32
    %c0_i32_0 = arith.constant 0 : i32
    %c0_i32_1 = arith.constant 0 : i32
    return %c0_i32, %c0_i32_0 : i32, i32
  }
  func.func @transform_10(%arg0: i32, %arg1: i32) -> (i32, i32) {
    %c0_i32 = arith.constant 0 : i32
    %c0_i32_0 = arith.constant 0 : i32
    %c0_i32_1 = arith.constant 0 : i32
    return %c0_i32, %c0_i32_0 : i32, i32
  }
  func.func @transform_11(%arg0: i32, %arg1: i32) -> (i32, i32) {
    %c0_i32 = arith.constant 0 : i32
    %c0_i32_0 = arith.constant 0 : i32
    %c0_i32_1 = arith.constant 0 : i32
    return %c0_i32, %c0_i32_0 : i32, i32
  }
  func.func @transform_12(%arg0: i32, %arg1: i32) -> (i32, i32, i32) {
    %c0_i32 = arith.constant 0 : i32
    %c0_i32_0 = arith.constant 0 : i32
    return %arg0, %arg1, %c0_i32 : i32, i32, i32
  }
  func.func @transform_13(%arg0: i32, %arg1: i32) -> (i32, i32, i32, i32) {
    %c0_i32 = arith.constant 0 : i32
    %c0_i32_0 = arith.constant 0 : i32
    %c0_i32_1 = arith.constant 0 : i32
    return %arg0, %c0_i32, %arg1, %c0_i32_0 : i32, i32, i32, i32
  }
}

</mosaic_0001>

<llo_original>
// kernel: tpu_custom_call.1
$region0: #{tpu_custom_call.1}
  #allocation0 [shape = 'u32[]', space=smem, size = 0x4, offset = 0x4, fixed_abs, tag = 'smem constant byte address 0x4 - core index']
  #allocation1 [shape = 'u32[144,128]{1,0:T(1,128)}', space=vmem, size = 0x12000, scoped, tag = 'internal scratch']
  %s0 = inlined_call_operand.hbm [shape: f32[2,8,32], index: 0, kind: input, shape index: {}]
  %s1 = inlined_call_operand.hbm [shape: f32[2,8,32], index: 1, kind: input, shape index: {}]
  %s2 = inlined_call_operand.hbm [shape: f32[2,8,32], index: 2, kind: input, shape index: {}]
  %s3 = inlined_call_operand.vmem [shape: s32[2,1,8], index: 3, kind: input, shape index: {}]
  %s4 = inlined_call_operand.hbm [shape: f32[32,32], index: 4, kind: input, shape index: {}]
  %s5 = inlined_call_operand.vmem [shape: f32[1,32], index: 5, kind: input, shape index: {}]
  %s6 = inlined_call_operand.hbm [shape: f32[32,32], index: 6, kind: input, shape index: {}]
  %s7 = inlined_call_operand.vmem [shape: f32[1,32], index: 7, kind: input, shape index: {}]
  %s8 = inlined_call_operand.hbm [shape: f32[32,32], index: 8, kind: input, shape index: {}]
  %s9 = inlined_call_operand.vmem [shape: f32[1,32], index: 9, kind: input, shape index: {}]
  %s10 = inlined_call_operand.vmem [shape: f32[32,32], index: 10, kind: input, shape index: {}]
  %s11 = inlined_call_operand.vmem [shape: f32[1,32], index: 11, kind: input, shape index: {}]
  %s12 = inlined_call_operand.hbm [shape: f32[2,8,32], index: 12, kind: output, shape index: {0}]
  %s13 = inlined_call_operand.hbm [shape: f32[2,4,8,8], index: 13, kind: output, shape index: {1}]
  %14 = xla_tuple %s12, %s13
  %s15 = sld [smem:[#allocation0]]
  $region113: #{tpu_custom_call.1} parent=0
    _
  %s17 = ssub.s32 1, %s15
  %s18 = scalar_select 0, %s17, %s15
  $region1: #{tpu_custom_call.1} parent=0
    #allocation2 [shape = 'u8[8192]{0}', space=vmem, size = 0x2000, scoped, tag = 'input window, operand 0']
    #allocation3 [shape = 's32[2]{0}', space=sflag, size = 0x8, scoped, tag = 'scoped memory for tpu_custom_call.1']
    #allocation4 [shape = 's32[2]{0}', space=sflag, size = 0x8, scoped, tag = 'scoped memory for tpu_custom_call.1']
    #allocation5 [shape = 'u8[8192]{0}', space=vmem, size = 0x2000, scoped, tag = 'input window, operand 1']
    #allocation6 [shape = 's32[2]{0}', space=sflag, size = 0x8, scoped, tag = 'scoped memory for tpu_custom_call.1']
    #allocation7 [shape = 'u8[8192]{0}', space=vmem, size = 0x2000, scoped, tag = 'input window, operand 2']
    #allocation8 [shape = 'u8[16384]{0}', space=vmem, size = 0x4000, scoped, tag = 'input window, operand 4, single buffered']
    #allocation9 [shape = 's32[1]{0}', space=sflag, size = 0x4, scoped, tag = 'scoped memory for tpu_custom_call.1']
    #allocation10 [shape = 'u8[16384]{0}', space=vmem, size = 0x4000, scoped, tag = 'input window, operand 6, single buffered']
    #allocation11 [shape = 'u8[16384]{0}', space=vmem, size = 0x4000, scoped, tag = 'input window, operand 8, single buffered']
    #allocation12 [shape = 's32[1]{0}', space=sflag, size = 0x4, scoped, tag = 'scoped memory for tpu_custom_call.1']
    #allocation13 [shape = 'u8[8192]{0}', space=vmem, size = 0x2000, scoped, tag = 'output window, operand 0']
    #allocation14 [shape = 'u8[32768]{0}', space=vmem, size = 0x8000, scoped, tag = 'output window, operand 1']
    #allocation15 [shape = 's32[2]{0}', space=sflag, size = 0x8, scoped, tag = 'scoped memory for tpu_custom_call.1']
    %19 = vsyncpa [#allocation3], 0
    %s20 = scalar_lea.sflag [#allocation3], 1
    %21 = vsyncpa %s20, 0
    %22 = vsyncpa [#allocation6], 0
    %s23 = scalar_lea.sflag [#allocation6], 1
    %24 = vsyncpa %s23, 0
    %25 = vsyncpa [#allocation9], 0
    %26 = vsyncpa [#allocation12], 0
    %27 = vsyncpa [#allocation4], 0
    %s28 = scalar_lea.sflag [#allocation4], 1
    %29 = vsyncpa %s28, 0
    %30 = vsyncpa [#allocation15], 0
    %s31 = scalar_lea.sflag [#allocation15], 1
    %32 = vsyncpa %s31, 0
    loop: start=0, step=1, limit=4
    $region2: #{tpu_custom_call.1} parent=1 // loop_pre_header
      _
    $region3: #{tpu_custom_call.1} parent=1 // loop_header
      %s34 = sphi 0, %s38
      %p35 = scmp.ge.s32.totalorder %s34, 4
      %s41 = sphi 0, %s53
      %s42 = sphi 0, %s49
      %s43 = sphi 0, %s41
      %s44 = sphi 0, %s42
      %s45 = sphi 0, %s43
      %s46 = sphi 0, %s44
      %s58 = sphi 0, %s60
      %s61 = sphi 0, %s58
      %s62 = sphi 0, %s61
      %s78 = sphi 0, %s62
      %s84 = sphi 0, %s86
      %s87 = sphi 0, %s84
      %s88 = sphi 0, %s87
      %s104 = sphi 0, %s88
      %s110 = sphi 0, %s112
      %s113 = sphi 0, %s110
      %s114 = sphi 0, %s113
      %s130 = sphi 0, %s114
      %s136 = sphi 0, %s138
      %s139 = sphi 0, %s136
      %s140 = sphi 0, %s139
      %s156 = sphi 0, %s140
      %s160 = sphi 0, %s160
      %s162 = sphi 0, %s160
      %s163 = sphi 0, %s162
      %s177 = sphi 0, %s163
      %s181 = sphi 0, %s181
      %s183 = sphi 0, %s181
      %s184 = sphi 0, %s183
      %s198 = sphi 0, %s184
      %s202 = sphi 0, %s202
      %s204 = sphi 0, %s202
      %s205 = sphi 0, %s204
      %s219 = sphi 0, %s205
      %s223 = sphi 0, %s223
      %s225 = sphi 0, %s223
      %s226 = sphi 0, %s225
      %s240 = sphi 0, %s226
      %s244 = sphi 0, %s244
      %s246 = sphi 0, %s244
      %s247 = sphi 0, %s246
      %s261 = sphi 0, %s247
      %s265 = sphi 0, %s265
      %s267 = sphi 0, %s265
      %s268 = sphi 0, %s267
      %s282 = sphi 0, %s268
      %s286 = sphi 0, %s286
      %s288 = sphi 0, %s286
      %s289 = sphi 0, %s288
      %s303 = sphi 0, %s289
      %s307 = sphi 0, %s307
      %s309 = sphi 0, %s307
      %s310 = sphi 0, %s309
      %s324 = sphi 0, %s310
      %s332 = sphi 0, %s334
      %s335 = sphi 0, %s332
      %s336 = sphi 0, %s335
      %s352 = sphi 0, %s336
      %s360 = sphi 0, %s362
      %s363 = sphi 0, %s360
      %s364 = sphi 0, %s363
      %s380 = sphi 0, %s364
    $region4: #{tpu_custom_call.1} parent=1 // loop_header_branch
      %37 = sbr.rel (%p35) target = $region8
    $region5: #{tpu_custom_call.1} parent=1 // loop_body
      %s39 = ssub.s32 %s34, 1
      %s40 = ssub.s32 %s34, 2
      %s47 = sadd.s32 1, %s42
      %p48 = scmp.ge.s32.totalorder %s47, 1
      %s49 = scalar_select %p48, 0, %s47
      %s50 = sadd.s32 1, %s41
      %s51 = scalar_select %p48, %s50, %s41
      %p52 = scmp.ge.s32.totalorder %s51, 2
      %s53 = scalar_select %p52, 0, %s51
      %s54 = ssub.s32 %s41, %s53
      %s55 = ssub.s32 %s42, %s49
      %s56 = sor.u32 %s54, %s55
      %p57 = scmp.eq.s32.totalorder %s56, 0
      %s59 = sadd.s32 %s58, 1
      %s60 = scalar_select %p57, %s58, %s59
      %p63 = pneg %p57
      %p64 = scmp.eq.s32.totalorder %s34, 1
      %p65 = por %p63, %p64
      %p66 = scmp.ne.s32.totalorder %s58, %s61
      %p67 = scmp.eq.s32.totalorder %s34, 0
      %p68 = por %p66, %p67
      %p69 = scmp.ne.s32.totalorder %s58, %s61
      %p70 = scmp.eq.s32.totalorder %s39, 1
      %p71 = por %p69, %p70
      %p72 = scmp.ne.s32.totalorder %s61, %s62
      %p73 = scmp.eq.s32.totalorder %s39, 0
      %p74 = por %p72, %p73
      %p75 = scmp.ne.s32.totalorder %s61, %s62
      %p76 = scmp.eq.s32.totalorder %s40, 1
      %p77 = por %p75, %p76
      %p79 = scmp.ne.s32.totalorder %s62, %s78
      %p80 = scmp.eq.s32.totalorder %s40, 0
      %p81 = por %p79, %p80
      %s82 = ssub.s32 %s41, %s53
      %p83 = scmp.eq.s32.totalorder %s82, 0
      %s85 = sadd.s32 %s84, 1
      %s86 = scalar_select %p83, %s84, %s85
      %p89 = pneg %p83
      %p90 = scmp.eq.s32.totalorder %s34, 1
      %p91 = por %p89, %p90
      %p92 = scmp.ne.s32.totalorder %s84, %s87
      %p93 = scmp.eq.s32.totalorder %s34, 0
      %p94 = por %p92, %p93
      %p95 = scmp.ne.s32.totalorder %s84, %s87
      %p96 = scmp.eq.s32.totalorder %s39, 1
      %p97 = por %p95, %p96
      %p98 = scmp.ne.s32.totalorder %s87, %s88
      %p99 = scmp.eq.s32.totalorder %s39, 0
      %p100 = por %p98, %p99
      %p101 = scmp.ne.s32.totalorder %s87, %s88
      %p102 = scmp.eq.s32.totalorder %s40, 1
      %p103 = por %p101, %p102
      %p105 = scmp.ne.s32.totalorder %s88, %s104
      %p106 = scmp.eq.s32.totalorder %s40, 0
      %p107 = por %p105, %p106
      %s108 = ssub.s32 %s41, %s53
      %p109 = scmp.eq.s32.totalorder %s108, 0
      %s111 = sadd.s32 %s110, 1
      %s112 = scalar_select %p109, %s110, %s111
      %p115 = pneg %p109
      %p116 = scmp.eq.s32.totalorder %s34, 1
      %p117 = por %p115, %p116
      %p118 = scmp.ne.s32.totalorder %s110, %s113
      %p119 = scmp.eq.s32.totalorder %s34, 0
      %p120 = por %p118, %p119
      %p121 = scmp.ne.s32.totalorder %s110, %s113
      %p122 = scmp.eq.s32.totalorder %s39, 1
      %p123 = por %p121, %p122
      %p124 = scmp.ne.s32.totalorder %s113, %s114
      %p125 = scmp.eq.s32.totalorder %s39, 0
      %p126 = por %p124, %p125
      %p127 = scmp.ne.s32.totalorder %s113, %s114
      %p128 = scmp.eq.s32.totalorder %s40, 1
      %p129 = por %p127, %p128
      %p131 = scmp.ne.s32.totalorder %s114, %s130
      %p132 = scmp.eq.s32.totalorder %s40, 0
      %p133 = por %p131, %p132
      %s134 = ssub.s32 %s41, %s53
      %p135 = scmp.eq.s32.totalorder %s134, 0
      %s137 = sadd.s32 %s136, 1
      %s138 = scalar_select %p135, %s136, %s137
      %p141 = pneg %p135
      %p142 = scmp.eq.s32.totalorder %s34, 1
      %p143 = por %p141, %p142
      %p144 = scmp.ne.s32.totalorder %s136, %s139
      %p145 = scmp.eq.s32.totalorder %s34, 0
      %p146 = por %p144, %p145
      %p147 = scmp.ne.s32.totalorder %s136, %s139
      %p148 = scmp.eq.s32.totalorder %s39, 1
      %p149 = por %p147, %p148
      %p150 = scmp.ne.s32.totalorder %s139, %s140
      %p151 = scmp.eq.s32.totalorder %s39, 0
      %p152 = por %p150, %p151
      %p153 = scmp.ne.s32.totalorder %s139, %s140
      %p154 = scmp.eq.s32.totalorder %s40, 1
      %p155 = por %p153, %p154
      %p157 = scmp.ne.s32.totalorder %s140, %s156
      %p158 = scmp.eq.s32.totalorder %s40, 0
      %p159 = por %p157, %p158
      %s161 = sadd.s32 %s160, 1
      %p164 = scmp.eq.s32.totalorder %s34, 1
      %p165 = scmp.ne.s32.totalorder %s160, %s162
      %p166 = scmp.eq.s32.totalorder %s34, 0
      %p167 = por %p165, %p166
      %p168 = scmp.ne.s32.totalorder %s160, %s162
      %p169 = scmp.eq.s32.totalorder %s39, 1
      %p170 = por %p168, %p169
      %p171 = scmp.ne.s32.totalorder %s162, %s163
      %p172 = scmp.eq.s32.totalorder %s39, 0
      %p173 = por %p171, %p172
      %p174 = scmp.ne.s32.totalorder %s162, %s163
      %p175 = scmp.eq.s32.totalorder %s40, 1
      %p176 = por %p174, %p175
      %p178 = scmp.ne.s32.totalorder %s163, %s177
      %p179 = scmp.eq.s32.totalorder %s40, 0
      %p180 = por %p178, %p179
      %s182 = sadd.s32 %s181, 1
      %p185 = scmp.eq.s32.totalorder %s34, 1
      %p186 = scmp.ne.s32.totalorder %s181, %s183
      %p187 = scmp.eq.s32.totalorder %s34, 0
      %p188 = por %p186, %p187
      %p189 = scmp.ne.s32.totalorder %s181, %s183
      %p190 = scmp.eq.s32.totalorder %s39, 1
      %p191 = por %p189, %p190
      %p192 = scmp.ne.s32.totalorder %s183, %s184
      %p193 = scmp.eq.s32.totalorder %s39, 0
      %p194 = por %p192, %p193
      %p195 = scmp.ne.s32.totalorder %s183, %s184
      %p196 = scmp.eq.s32.totalorder %s40, 1
      %p197 = por %p195, %p196
      %p199 = scmp.ne.s32.totalorder %s184, %s198
      %p200 = scmp.eq.s32.totalorder %s40, 0
      %p201 = por %p199, %p200
      %s203 = sadd.s32 %s202, 1
      %p206 = scmp.eq.s32.totalorder %s34, 1
      %p207 = scmp.ne.s32.totalorder %s202, %s204
      %p208 = scmp.eq.s32.totalorder %s34, 0
      %p209 = por %p207, %p208
      %p210 = scmp.ne.s32.totalorder %s202, %s204
      %p211 = scmp.eq.s32.totalorder %s39, 1
      %p212 = por %p210, %p211
      %p213 = scmp.ne.s32.totalorder %s204, %s205
      %p214 = scmp.eq.s32.totalorder %s39, 0
      %p215 = por %p213, %p214
      %p216 = scmp.ne.s32.totalorder %s204, %s205
      %p217 = scmp.eq.s32.totalorder %s40, 1
      %p218 = por %p216, %p217
      %p220 = scmp.ne.s32.totalorder %s205, %s219
      %p221 = scmp.eq.s32.totalorder %s40, 0
      %p222 = por %p220, %p221
      %s224 = sadd.s32 %s223, 1
      %p227 = scmp.eq.s32.totalorder %s34, 1
      %p228 = scmp.ne.s32.totalorder %s223, %s225
      %p229 = scmp.eq.s32.totalorder %s34, 0
      %p230 = por %p228, %p229
      %p231 = scmp.ne.s32.totalorder %s223, %s225
      %p232 = scmp.eq.s32.totalorder %s39, 1
      %p233 = por %p231, %p232
      %p234 = scmp.ne.s32.totalorder %s225, %s226
      %p235 = scmp.eq.s32.totalorder %s39, 0
      %p236 = por %p234, %p235
      %p237 = scmp.ne.s32.totalorder %s225, %s226
      %p238 = scmp.eq.s32.totalorder %s40, 1
      %p239 = por %p237, %p238
      %p241 = scmp.ne.s32.totalorder %s226, %s240
      %p242 = scmp.eq.s32.totalorder %s40, 0
      %p243 = por %p241, %p242
      %s245 = sadd.s32 %s244, 1
      %p248 = scmp.eq.s32.totalorder %s34, 1
      %p249 = scmp.ne.s32.totalorder %s244, %s246
      %p250 = scmp.eq.s32.totalorder %s34, 0
      %p251 = por %p249, %p250
      %p252 = scmp.ne.s32.totalorder %s244, %s246
      %p253 = scmp.eq.s32.totalorder %s39, 1
      %p254 = por %p252, %p253
      %p255 = scmp.ne.s32.totalorder %s246, %s247
      %p256 = scmp.eq.s32.totalorder %s39, 0
      %p257 = por %p255, %p256
      %p258 = scmp.ne.s32.totalorder %s246, %s247
      %p259 = scmp.eq.s32.totalorder %s40, 1
      %p260 = por %p258, %p259
      %p262 = scmp.ne.s32.totalorder %s247, %s261
      %p263 = scmp.eq.s32.totalorder %s40, 0
      %p264 = por %p262, %p263
      %s266 = sadd.s32 %s265, 1
      %p269 = scmp.eq.s32.totalorder %s34, 1
      %p270 = scmp.ne.s32.totalorder %s265, %s267
      %p271 = scmp.eq.s32.totalorder %s34, 0
      %p272 = por %p270, %p271
      %p273 = scmp.ne.s32.totalorder %s265, %s267
      %p274 = scmp.eq.s32.totalorder %s39, 1
      %p275 = por %p273, %p274
      %p276 = scmp.ne.s32.totalorder %s267, %s268
      %p277 = scmp.eq.s32.totalorder %s39, 0
      %p278 = por %p276, %p277
      %p279 = scmp.ne.s32.totalorder %s267, %s268
      %p280 = scmp.eq.s32.totalorder %s40, 1
      %p281 = por %p279, %p280
      %p283 = scmp.ne.s32.totalorder %s268, %s282
      %p284 = scmp.eq.s32.totalorder %s40, 0
      %p285 = por %p283, %p284
      %s287 = sadd.s32 %s286, 1
      %p290 = scmp.eq.s32.totalorder %s34, 1
      %p291 = scmp.ne.s32.totalorder %s286, %s288
      %p292 = scmp.eq.s32.totalorder %s34, 0
      %p293 = por %p291, %p292
      %p294 = scmp.ne.s32.totalorder %s286, %s288
      %p295 = scmp.eq.s32.totalorder %s39, 1
      %p296 = por %p294, %p295
      %p297 = scmp.ne.s32.totalorder %s288, %s289
      %p298 = scmp.eq.s32.totalorder %s39, 0
      %p299 = por %p297, %p298
      %p300 = scmp.ne.s32.totalorder %s288, %s289
      %p301 = scmp.eq.s32.totalorder %s40, 1
      %p302 = por %p300, %p301
      %p304 = scmp.ne.s32.totalorder %s289, %s303
      %p305 = scmp.eq.s32.totalorder %s40, 0
      %p306 = por %p304, %p305
      %s308 = sadd.s32 %s307, 1
      %p311 = scmp.eq.s32.totalorder %s34, 1
      %p312 = scmp.ne.s32.totalorder %s307, %s309
      %p313 = scmp.eq.s32.totalorder %s34, 0
      %p314 = por %p312, %p313
      %p315 = scmp.ne.s32.totalorder %s307, %s309
      %p316 = scmp.eq.s32.totalorder %s39, 1
      %p317 = por %p315, %p316
      %p318 = scmp.ne.s32.totalorder %s309, %s310
      %p319 = scmp.eq.s32.totalorder %s39, 0
      %p320 = por %p318, %p319
      %p321 = scmp.ne.s32.totalorder %s309, %s310
      %p322 = scmp.eq.s32.totalorder %s40, 1
      %p323 = por %p321, %p322
      %p325 = scmp.ne.s32.totalorder %s310, %s324
      %p326 = scmp.eq.s32.totalorder %s40, 0
      %p327 = por %p325, %p326
      %s328 = ssub.s32 %s41, %s53
      %s329 = ssub.s32 %s42, %s49
      %s330 = sor.u32 %s328, %s329
      %p331 = scmp.eq.s32.totalorder %s330, 0
      %s333 = sadd.s32 %s332, 1
      %s334 = scalar_select %p331, %s332, %s333
      %p337 = pneg %p331
      %p338 = scmp.eq.s32.totalorder %s34, 1
      %p339 = por %p337, %p338
      %p340 = scmp.ne.s32.totalorder %s332, %s335
      %p341 = scmp.eq.s32.totalorder %s34, 0
      %p342 = por %p340, %p341
      %p343 = scmp.ne.s32.totalorder %s332, %s335
      %p344 = scmp.eq.s32.totalorder %s39, 1
      %p345 = por %p343, %p344
      %p346 = scmp.ne.s32.totalorder %s335, %s336
      %p347 = scmp.eq.s32.totalorder %s39, 0
      %p348 = por %p346, %p347
      %p349 = scmp.ne.s32.totalorder %s335, %s336
      %p350 = scmp.eq.s32.totalorder %s40, 1
      %p351 = por %p349, %p350
      %p353 = scmp.ne.s32.totalorder %s336, %s352
      %p354 = scmp.eq.s32.totalorder %s40, 0
      %p355 = por %p353, %p354
      %s356 = ssub.s32 %s41, %s53
      %s357 = ssub.s32 %s42, %s49
      %s358 = sor.u32 %s356, %s357
      %p359 = scmp.eq.s32.totalorder %s358, 0
      %s361 = sadd.s32 %s360, 1
      %s362 = scalar_select %p359, %s360, %s361
      %p365 = pneg %p359
      %p366 = scmp.eq.s32.totalorder %s34, 1
      %p367 = por %p365, %p366
      %p368 = scmp.ne.s32.totalorder %s360, %s363
      %p369 = scmp.eq.s32.totalorder %s34, 0
      %p370 = por %p368, %p369
      %p371 = scmp.ne.s32.totalorder %s360, %s363
      %p372 = scmp.eq.s32.totalorder %s39, 1
      %p373 = por %p371, %p372
      %p374 = scmp.ne.s32.totalorder %s363, %s364
      %p375 = scmp.eq.s32.totalorder %s39, 0
      %p376 = por %p374, %p375
      %p377 = scmp.ne.s32.totalorder %s363, %s364
      %p378 = scmp.eq.s32.totalorder %s40, 1
      %p379 = por %p377, %p378
      %p381 = scmp.ne.s32.totalorder %s364, %s380
      %p382 = scmp.eq.s32.totalorder %s40, 0
      %p383 = por %p381, %p382
      %p384 = scmp.le.s32.totalorder 1, %s34
      %p385 = scmp.lt.s32.totalorder %s34, 3
      %p386 = pnand %p384, %p385
      %p387 = pneg %p386
      // Predicated region
      $region9: #{tpu_custom_call.1} parent=5 // pred_check
        _
      $region10: #{tpu_custom_call.1} parent=5 // pred_check_branch
        %389 = sbr.rel (%p386) target = $region12
      $region11: #{tpu_custom_call.1} parent=5 // pred_region
        %s390 = ssub.s32 %s34, 1
        // Predicated region
        $region13: #{tpu_custom_call.1} parent=11 // pred_check
          %p391 = pneg %p173
        $region14: #{tpu_custom_call.1} parent=11 // pred_check_branch
          %393 = sbr.rel (%p391) target = $region16
        $region15: #{tpu_custom_call.1} parent=11 // pred_region
          %s395 = ssub.s32 512, 512
          %396 = vsyncadd [#allocation9], %s395
          %s397 = sshll.u32 [#allocation8], 4
          %s398 = int_to_ptr.vmem [resolvable:$true] %s397
          %403 = dma.hbm_to_vmem [thread:$0]  %s4, 512, %s398, [#allocation9], 128, 128, 8
        $region16: #{tpu_custom_call.1} parent=11 // pred_fallthru
          _
        // Predicated region
        $region17: #{tpu_custom_call.1} parent=11 // pred_check
          %p404 = pneg %p194
        $region18: #{tpu_custom_call.1} parent=11 // pred_check_branch
          %406 = sbr.rel (%p404) target = $region20
        $region19: #{tpu_custom_call.1} parent=11 // pred_region
          _
        $region20: #{tpu_custom_call.1} parent=11 // pred_fallthru
          _
        // Predicated region
        $region21: #{tpu_custom_call.1} parent=11 // pred_check
          %p407 = pneg %p215
        $region22: #{tpu_custom_call.1} parent=11 // pred_check_branch
          %409 = sbr.rel (%p407) target = $region24
        $region23: #{tpu_custom_call.1} parent=11 // pred_region
          %s411 = ssub.s32 512, 512
          %412 = vsyncadd [#allocation9], %s411
          %s413 = sshll.u32 [#allocation10], 4
          %s414 = int_to_ptr.vmem [resolvable:$true] %s413
          %419 = dma.hbm_to_vmem [thread:$0]  %s6, 512, %s414, [#allocation9], 128, 128, 8
        $region24: #{tpu_custom_call.1} parent=11 // pred_fallthru
          _
        // Predicated region
        $region25: #{tpu_custom_call.1} parent=11 // pred_check
          %p420 = pneg %p236
        $region26: #{tpu_custom_call.1} parent=11 // pred_check_branch
          %422 = sbr.rel (%p420) target = $region28
        $region27: #{tpu_custom_call.1} parent=11 // pred_region
          _
        $region28: #{tpu_custom_call.1} parent=11 // pred_fallthru
          _
        // Predicated region
        $region29: #{tpu_custom_call.1} parent=11 // pred_check
          %p423 = pneg %p257
        $region30: #{tpu_custom_call.1} parent=11 // pred_check_branch
          %425 = sbr.rel (%p423) target = $region32
        $region31: #{tpu_custom_call.1} parent=11 // pred_region
          %s427 = ssub.s32 512, 512
          %428 = vsyncadd [#allocation12], %s427
          %s429 = sshll.u32 [#allocation11], 4
          %s430 = int_to_ptr.vmem [resolvable:$true] %s429
          %435 = dma.hbm_to_vmem [thread:$0]  %s8, 512, %s430, [#allocation12], 128, 128, 8
        $region32: #{tpu_custom_call.1} parent=11 // pred_fallthru
          _
        // Predicated region
        $region33: #{tpu_custom_call.1} parent=11 // pred_check
          %p436 = pneg %p278
        $region34: #{tpu_custom_call.1} parent=11 // pred_check_branch
          %438 = sbr.rel (%p436) target = $region36
        $region35: #{tpu_custom_call.1} parent=11 // pred_region
          _
        $region36: #{tpu_custom_call.1} parent=11 // pred_fallthru
          _
        // Predicated region
        $region37: #{tpu_custom_call.1} parent=11 // pred_check
          %p439 = pneg %p299
        $region38: #{tpu_custom_call.1} parent=11 // pred_check_branch
          %441 = sbr.rel (%p439) target = $region40
        $region39: #{tpu_custom_call.1} parent=11 // pred_region
          _
        $region40: #{tpu_custom_call.1} parent=11 // pred_fallthru
          _
        // Predicated region
        $region41: #{tpu_custom_call.1} parent=11 // pred_check
          %p442 = pneg %p320
        $region42: #{tpu_custom_call.1} parent=11 // pred_check_branch
          %444 = sbr.rel (%p442) target = $region44
        $region43: #{tpu_custom_call.1} parent=11 // pred_region
          _
        $region44: #{tpu_custom_call.1} parent=11 // pred_fallthru
          _
      $region12: #{tpu_custom_call.1} parent=5 // pred_fallthru
        _
      %p445 = scmp.lt.s32.totalorder %s34, 2
      // Predicated region
      $region45: #{tpu_custom_call.1} parent=5 // pred_check
        %p446 = pneg %p445
      $region46: #{tpu_custom_call.1} parent=5 // pred_check_branch
        %448 = sbr.rel (%p446) target = $region48
      $region47: #{tpu_custom_call.1} parent=5 // pred_region
        // Predicated region
        $region49: #{tpu_custom_call.1} parent=47 // pred_check
          %p449 = pneg %p68
        $region50: #{tpu_custom_call.1} parent=47 // pred_check_branch
          %451 = sbr.rel (%p449) target = $region52
        $region51: #{tpu_custom_call.1} parent=47 // pred_region
          %s452 = sand.u32 %s58, 1
          %s453 = scalar_lea.sflag [#allocation3], %s452
          %s454 = sand.u32 %s58, 1
          %s455 = smul.addr %s454, 8
          %s456 = scalar_lea.vmem [#allocation2], %s455
          %s458 = ssub.s32 128, 128
          %459 = vsyncadd %s453, %s458
          %s460 = sadd.s32 %s42, %s41
          %s461 = smul.addr %s460, 128
          %s462 = scalar_lea.hbm %s0, %s461
          %s464 = sshll.u32 %s456, 4
          %s465 = int_to_ptr.vmem [resolvable:$true] %s464
          %467 = dma.hbm_to_vmem [thread:$0]  %s462, 128, %s465, %s453
        $region52: #{tpu_custom_call.1} parent=47 // pred_fallthru
          _
        // Predicated region
        $region53: #{tpu_custom_call.1} parent=47 // pred_check
          %p468 = pneg %p94
        $region54: #{tpu_custom_call.1} parent=47 // pred_check_branch
          %470 = sbr.rel (%p468) target = $region56
        $region55: #{tpu_custom_call.1} parent=47 // pred_region
          %s471 = sand.u32 %s34, 1
          %s472 = scalar_lea.sflag [#allocation6], %s471
          %s473 = sand.u32 %s84, 1
          %s474 = smul.addr %s473, 8
          %s475 = scalar_lea.vmem [#allocation5], %s474
          %s477 = ssub.s32 128, 128
          %478 = vsyncadd %s472, %s477
          %s479 = smul.addr %s41, 128
          %s480 = scalar_lea.hbm %s1, %s479
          %s482 = sshll.u32 %s475, 4
          %s483 = int_to_ptr.vmem [resolvable:$true] %s482
          %485 = dma.hbm_to_vmem [thread:$0]  %s480, 128, %s483, %s472
        $region56: #{tpu_custom_call.1} parent=47 // pred_fallthru
          _
        // Predicated region
        $region57: #{tpu_custom_call.1} parent=47 // pred_check
          %p486 = pneg %p120
        $region58: #{tpu_custom_call.1} parent=47 // pred_check_branch
          %488 = sbr.rel (%p486) target = $region60
        $region59: #{tpu_custom_call.1} parent=47 // pred_region
          %s489 = sand.u32 %s34, 1
          %s490 = scalar_lea.sflag [#allocation6], %s489
          %s491 = sand.u32 %s110, 1
          %s492 = smul.addr %s491, 8
          %s493 = scalar_lea.vmem [#allocation7], %s492
          %s495 = ssub.s32 128, 128
          %496 = vsyncadd %s490, %s495
          %s497 = smul.addr %s41, 128
          %s498 = scalar_lea.hbm %s2, %s497
          %s500 = sshll.u32 %s493, 4
          %s501 = int_to_ptr.vmem [resolvable:$true] %s500
          %503 = dma.hbm_to_vmem [thread:$0]  %s498, 128, %s501, %s490
        $region60: #{tpu_custom_call.1} parent=47 // pred_fallthru
          _
        // Predicated region
        $region61: #{tpu_custom_call.1} parent=47 // pred_check
          %p504 = pneg %p146
        $region62: #{tpu_custom_call.1} parent=47 // pred_check_branch
          %506 = sbr.rel (%p504) target = $region64
        $region63: #{tpu_custom_call.1} parent=47 // pred_region
          %p507 = scmp.lt.s32.totalorder %s41, 1
          %s508 = scalar_select %p507, %s41, 1
          %s509 = scalar_lea.vmem %s3, %s508
        $region64: #{tpu_custom_call.1} parent=47 // pred_fallthru
          _
      $region48: #{tpu_custom_call.1} parent=5 // pred_fallthru
        _
      %p510 = scmp.le.s32.totalorder 1, %s34
      %p511 = scmp.lt.s32.totalorder %s34, 3
      %p512 = pnand %p510, %p511
      %p513 = pneg %p512
      // Predicated region
      $region65: #{tpu_custom_call.1} parent=5 // pred_check
        _
      $region66: #{tpu_custom_call.1} parent=5 // pred_check_branch
        %515 = sbr.rel (%p512) target = $region68
      $region67: #{tpu_custom_call.1} parent=5 // pred_region
        %s516 = ssub.s32 %s34, 1
        %s517 = sand.u32 %s61, 1
        %s518 = scalar_lea.sflag [#allocation3], %s517
        %s519 = sand.u32 %s61, 1
        %s520 = smul.addr %s519, 8
        %s521 = scalar_lea.vmem [#allocation2], %s520
        // Predicated region
        $region69: #{tpu_custom_call.1} parent=67 // pred_check
          %p522 = pneg %p74
        $region70: #{tpu_custom_call.1} parent=67 // pred_check_branch
          %524 = sbr.rel (%p522) target = $region72
        $region71: #{tpu_custom_call.1} parent=67 // pred_region
          %525 = dma.done %s518, 128
        $region72: #{tpu_custom_call.1} parent=67 // pred_fallthru
          _
        %s526 = sand.u32 %s39, 1
        %s527 = scalar_lea.sflag [#allocation6], %s526
        %s528 = sand.u32 %s87, 1
        %s529 = smul.addr %s528, 8
        %s530 = scalar_lea.vmem [#allocation5], %s529
        // Predicated region
        $region73: #{tpu_custom_call.1} parent=67 // pred_check
          %p531 = pneg %p100
        $region74: #{tpu_custom_call.1} parent=67 // pred_check_branch
          %533 = sbr.rel (%p531) target = $region76
        $region75: #{tpu_custom_call.1} parent=67 // pred_region
          %534 = dma.done %s527, 128
        $region76: #{tpu_custom_call.1} parent=67 // pred_fallthru
          _
        %s535 = sand.u32 %s39, 1
        %s536 = scalar_lea.sflag [#allocation6], %s535
        %s537 = sand.u32 %s113, 1
        %s538 = smul.addr %s537, 8
        %s539 = scalar_lea.vmem [#allocation7], %s538
        // Predicated region
        $region77: #{tpu_custom_call.1} parent=67 // pred_check
          %p540 = pneg %p126
        $region78: #{tpu_custom_call.1} parent=67 // pred_check_branch
          %542 = sbr.rel (%p540) target = $region80
        $region79: #{tpu_custom_call.1} parent=67 // pred_region
          %543 = dma.done %s536, 128
        $region80: #{tpu_custom_call.1} parent=67 // pred_fallthru
          _
        // Predicated region
        $region81: #{tpu_custom_call.1} parent=67 // pred_check
          %p544 = pneg %p173
        $region82: #{tpu_custom_call.1} parent=67 // pred_check_branch
          %546 = sbr.rel (%p544) target = $region84
        $region83: #{tpu_custom_call.1} parent=67 // pred_region
          %547 = dma.done [#allocation9], 512
        $region84: #{tpu_custom_call.1} parent=67 // pred_fallthru
          _
        // Predicated region
        $region85: #{tpu_custom_call.1} parent=67 // pred_check
          %p548 = pneg %p215
        $region86: #{tpu_custom_call.1} parent=67 // pred_check_branch
          %550 = sbr.rel (%p548) target = $region88
        $region87: #{tpu_custom_call.1} parent=67 // pred_region
          %551 = dma.done [#allocation9], 512
        $region88: #{tpu_custom_call.1} parent=67 // pred_fallthru
          _
        // Predicated region
        $region89: #{tpu_custom_call.1} parent=67 // pred_check
          %p552 = pneg %p257
        $region90: #{tpu_custom_call.1} parent=67 // pred_check_branch
          %554 = sbr.rel (%p552) target = $region92
        $region91: #{tpu_custom_call.1} parent=67 // pred_region
          %555 = dma.done [#allocation12], 512
        $region92: #{tpu_custom_call.1} parent=67 // pred_fallthru
          _
        %s556 = sand.u32 %s61, 1
        %s557 = scalar_lea.sflag [#allocation3], %s556
        %s558 = sand.u32 %s61, 1
        %s559 = smul.addr %s558, 8
        %s560 = scalar_lea.vmem [#allocation2], %s559
        %p561 = pneg %p74
        %p562 = pneg %p71
        %s563 = sand.u32 %s39, 1
        %s564 = scalar_lea.sflag [#allocation6], %s563
        %s565 = sand.u32 %s87, 1
        %s566 = smul.addr %s565, 8
        %s567 = scalar_lea.vmem [#allocation5], %s566
        %p568 = pneg %p100
        %p569 = pneg %p97
        %s570 = sand.u32 %s39, 1
        %s571 = scalar_lea.sflag [#allocation6], %s570
        %s572 = sand.u32 %s113, 1
        %s573 = smul.addr %s572, 8
        %s574 = scalar_lea.vmem [#allocation7], %s573
        %p575 = pneg %p126
        %p576 = pneg %p123
        %p577 = scmp.lt.s32.totalorder %s43, 1
        %s578 = scalar_select %p577, %s43, 1
        %s579 = scalar_lea.vmem %s3, %s578
        %p580 = pneg %p152
        %p581 = pneg %p149
        %p582 = pneg %p173
        %p583 = pneg %p170
        %p584 = pneg %p194
        %p585 = pneg %p191
        %p586 = pneg %p215
        %p587 = pneg %p212
        %p588 = pneg %p236
        %p589 = pneg %p233
        %p590 = pneg %p257
        %p591 = pneg %p254
        %p592 = pneg %p278
        %p593 = pneg %p275
        %p594 = pneg %p299
        %p595 = pneg %p296
        %p596 = pneg %p320
        %p597 = pneg %p317
        %p598 = pneg %p348
        %p599 = pneg %p345
        %s600 = sand.u32 %s335, 1
        %s601 = scalar_lea.sflag [#allocation4], %s600
        %s602 = sand.u32 %s335, 1
        %s603 = smul.addr %s602, 8
        %s604 = scalar_lea.vmem [#allocation13], %s603
        %p605 = pneg %p376
        %p606 = pneg %p373
        %s607 = sand.u32 %s363, 1
        %s608 = scalar_lea.sflag [#allocation15], %s607
        %s609 = sand.u32 %s363, 1
        %s610 = smul.addr %s609, 32
        %s611 = scalar_lea.vmem [#allocation14], %s610
        %p612 = scmp.lt.s32.totalorder %s43, 1
        %s613 = scalar_select %p612, %s43, 1
        %s614 = scalar_lea.vmem %s3, %s613
        %v615 = vld [vmem:[%s521] sm:$0xff]
        %v616 = vld [vmem:[%s530] sm:$0xff]
        %v617 = vld [vmem:[%s539] sm:$0xff]
        %v618 = vld [vmem:[#allocation8] sm:$0xff]
        %v619 = vld [vmem:[#allocation8 + $0x8] sm:$0xff]
        %v620 = vld [vmem:[#allocation8 + $0x10] sm:$0xff]
        %v621 = vld [vmem:[#allocation8 + $0x18] sm:$0xff]
        %v622 = vld [vmem:[%s5] sm:$0x1]
        %v624 = vlaneseq
        %v625 = vshrl.u32 %v624, 7
        %v626 = vsub.s32 0, %v625
        %v627 = vrot.slane %v622, %v626
        %vm629 = vcmask 261120
        %v631 = vsel %vm629, %v615, 0
        %633 = vmatprep.subr.mxu0 0.0
        %634 = vmatpush1.msra.mxu0 %v618
        %635 = vmatprep.subr.mxu0 0.0
        %636 = vmatpush1.msra.mxu0 %v619
        %637 = vmatprep.subr.mxu0 0.0
        %638 = vmatpush1.msra.mxu0 %v620
        %639 = vmatprep.subr.mxu0 0.0
        %640 = vmatpush1.msra.mxu0 %v621
        %641 = vmatprep.subr.mxu0 0.0
        %642 = vmatpush1.msra.mxu0 0.0
        %643 = vmatprep.subr.mxu0 0.0
        %644 = vmatpush1.msra.mxu0 0.0
        %645 = vmatprep.subr.mxu0 0.0
        %646 = vmatpush1.msra.mxu0 0.0
        %647 = vmatprep.subr.mxu0 0.0
        %648 = vmatpush1.msra.mxu0 0.0
        %649 = vmatprep.subr.mxu0 0.0
        %650 = vmatpush1.msra.mxu0 0.0
        %651 = vmatprep.subr.mxu0 0.0
        %652 = vmatpush1.msra.mxu0 0.0
        %653 = vmatprep.subr.mxu0 0.0
        %654 = vmatpush1.msra.mxu0 0.0
        %655 = vmatprep.subr.mxu0 0.0
        %656 = vmatpush1.msra.mxu0 0.0
        %657 = vmatprep.subr.mxu0 0.0
        %658 = vmatpush1.msra.mxu0 0.0
        %659 = vmatprep.subr.mxu0 0.0
        %660 = vmatpush1.msra.mxu0 0.0
        %661 = vmatprep.subr.mxu0 0.0
        %662 = vmatpush1.msra.mxu0 0.0
        %663 = vmatprep.subr.mxu0 0.0
        %664 = vmatpush1.msra.mxu0 0.0
        %665 = vmatprep.subr.mxu0 0.0
        %666 = vmatpush1.msra.mxu0 0.0
        %667 = vmatprep.subr.mxu0 0.0
        %668 = vmatpush1.msra.mxu0 0.0
        %669 = vmatprep.subr.mxu0 0.0
        %670 = vmatpush1.msra.mxu0 0.0
        %671 = vmatprep.subr.mxu0 0.0
        %672 = vmatpush1.msra.mxu0 0.0
        %673 = vmatprep.subr.mxu0 0.0
        %674 = vmatpush1.msra.mxu0 0.0
        %675 = vmatprep.subr.mxu0 0.0
        %676 = vmatpush1.msra.mxu0 0.0
        %677 = vmatprep.subr.mxu0 0.0
        %678 = vmatpush1.msra.mxu0 0.0
        %679 = vmatprep.subr.mxu0 0.0
        %680 = vmatpush1.msra.mxu0 0.0
        %681 = vmatprep.subr.mxu0 0.0
        %682 = vmatpush1.msra.mxu0 0.0
        %683 = vmatprep.subr.mxu0 0.0
        %684 = vmatpush1.msra.mxu0 0.0
        %685 = vmatprep.subr.mxu0 0.0
        %686 = vmatpush1.msra.mxu0 0.0
        %687 = vmatprep.subr.mxu0 0.0
        %688 = vmatpush1.msra.mxu0 0.0
        %689 = vmatprep.subr.mxu0 0.0
        %690 = vmatpush1.msra.mxu0 0.0
        %691 = vmatprep.subr.mxu0 0.0
        %692 = vmatpush1.msra.mxu0 0.0
        %693 = vmatprep.subr.mxu0 0.0
        %694 = vmatpush1.msra.mxu0 0.0
        %695 = vmatprep.subr.mxu0 0.0
        %696 = vmatpush1.msra.mxu0 0.0
        %697 = vmatprep.mubr.f32.mxu0 0.0
        %698 = vmatmul.mubr.f32.gmra.mrb[0].mxu0 %v631
        %v699 = vpop.f32.mrb[0].mxu0
        %v700 = vadd.f32 %v627, %v699
        %v701 = vpop.f32.mrb[0].mxu0
        %702 = vdwg.mxu0
        %v703 = vld [vmem:[#allocation10] sm:$0xff]
        %v704 = vld [vmem:[#allocation10 + $0x8] sm:$0xff]
        %v705 = vld [vmem:[#allocation10 + $0x10] sm:$0xff]
        %v706 = vld [vmem:[#allocation10 + $0x18] sm:$0xff]
        %v707 = vld [vmem:[%s7] sm:$0x1]
        %v709 = vlaneseq
        %v710 = vshrl.u32 %v709, 7
        %v711 = vsub.s32 0, %v710
        %v712 = vrot.slane %v707, %v711
        %v715 = vsel %vm629, %v616, 0
        %717 = vmatprep.subr.mxu0 0.0
        %718 = vmatpush1.msra.mxu0 %v703
        %719 = vmatprep.subr.mxu0 0.0
        %720 = vmatpush1.msra.mxu0 %v704
        %721 = vmatprep.subr.mxu0 0.0
        %722 = vmatpush1.msra.mxu0 %v705
        %723 = vmatprep.subr.mxu0 0.0
        %724 = vmatpush1.msra.mxu0 %v706
        %725 = vmatprep.subr.mxu0 0.0
        %726 = vmatpush1.msra.mxu0 0.0
        %727 = vmatprep.subr.mxu0 0.0
        %728 = vmatpush1.msra.mxu0 0.0
        %729 = vmatprep.subr.mxu0 0.0
        %730 = vmatpush1.msra.mxu0 0.0
        %731 = vmatprep.subr.mxu0 0.0
        %732 = vmatpush1.msra.mxu0 0.0
        %733 = vmatprep.subr.mxu0 0.0
        %734 = vmatpush1.msra.mxu0 0.0
        %735 = vmatprep.subr.mxu0 0.0
        %736 = vmatpush1.msra.mxu0 0.0
        %737 = vmatprep.subr.mxu0 0.0
        %738 = vmatpush1.msra.mxu0 0.0
        %739 = vmatprep.subr.mxu0 0.0
        %740 = vmatpush1.msra.mxu0 0.0
        %741 = vmatprep.subr.mxu0 0.0
        %742 = vmatpush1.msra.mxu0 0.0
        %743 = vmatprep.subr.mxu0 0.0
        %744 = vmatpush1.msra.mxu0 0.0
        %745 = vmatprep.subr.mxu0 0.0
        %746 = vmatpush1.msra.mxu0 0.0
        %747 = vmatprep.subr.mxu0 0.0
        %748 = vmatpush1.msra.mxu0 0.0
        %749 = vmatprep.subr.mxu0 0.0
        %750 = vmatpush1.msra.mxu0 0.0
        %751 = vmatprep.subr.mxu0 0.0
        %752 = vmatpush1.msra.mxu0 0.0
        %753 = vmatprep.subr.mxu0 0.0
        %754 = vmatpush1.msra.mxu0 0.0
        %755 = vmatprep.subr.mxu0 0.0
        %756 = vmatpush1.msra.mxu0 0.0
        %757 = vmatprep.subr.mxu0 0.0
        %758 = vmatpush1.msra.mxu0 0.0
        %759 = vmatprep.subr.mxu0 0.0
        %760 = vmatpush1.msra.mxu0 0.0
        %761 = vmatprep.subr.mxu0 0.0
        %762 = vmatpush1.msra.mxu0 0.0
        %763 = vmatprep.subr.mxu0 0.0
        %764 = vmatpush1.msra.mxu0 0.0
        %765 = vmatprep.subr.mxu0 0.0
        %766 = vmatpush1.msra.mxu0 0.0
        %767 = vmatprep.subr.mxu0 0.0
        %768 = vmatpush1.msra.mxu0 0.0
        %769 = vmatprep.subr.mxu0 0.0
        %770 = vmatpush1.msra.mxu0 0.0
        %771 = vmatprep.subr.mxu0 0.0
        %772 = vmatpush1.msra.mxu0 0.0
        %773 = vmatprep.subr.mxu0 0.0
        %774 = vmatpush1.msra.mxu0 0.0
        %775 = vmatprep.subr.mxu0 0.0
        %776 = vmatpush1.msra.mxu0 0.0
        %777 = vmatprep.subr.mxu0 0.0
        %778 = vmatpush1.msra.mxu0 0.0
        %779 = vmatprep.subr.mxu0 0.0
        %780 = vmatpush1.msra.mxu0 0.0
        %781 = vmatprep.mubr.f32.mxu0 0.0
        %782 = vmatmul.mubr.f32.gmra.mrb[0].mxu0 %v715
        %v783 = vpop.f32.mrb[0].mxu0
        %v784 = vadd.f32 %v712, %v783
        %v785 = vpop.f32.mrb[0].mxu0
        %786 = vdwg.mxu0
        %v787 = vld [vmem:[#allocation11] sm:$0xff]
        %v788 = vld [vmem:[#allocation11 + $0x8] sm:$0xff]
        %v789 = vld [vmem:[#allocation11 + $0x10] sm:$0xff]
        %v790 = vld [vmem:[#allocation11 + $0x18] sm:$0xff]
        %v791 = vld [vmem:[%s9] sm:$0x1]
        %v793 = vlaneseq
        %v794 = vshrl.u32 %v793, 7
        %v795 = vsub.s32 0, %v794
        %v796 = vrot.slane %v791, %v795
        %v799 = vsel %vm629, %v617, 0
        %801 = vmatprep.subr.mxu0 0.0
        %802 = vmatpush1.msra.mxu0 %v787
        %803 = vmatprep.subr.mxu0 0.0
        %804 = vmatpush1.msra.mxu0 %v788
        %805 = vmatprep.subr.mxu0 0.0
        %806 = vmatpush1.msra.mxu0 %v789
        %807 = vmatprep.subr.mxu0 0.0
        %808 = vmatpush1.msra.mxu0 %v790
        %809 = vmatprep.subr.mxu0 0.0
        %810 = vmatpush1.msra.mxu0 0.0
        %811 = vmatprep.subr.mxu0 0.0
        %812 = vmatpush1.msra.mxu0 0.0
        %813 = vmatprep.subr.mxu0 0.0
        %814 = vmatpush1.msra.mxu0 0.0
        %815 = vmatprep.subr.mxu0 0.0
        %816 = vmatpush1.msra.mxu0 0.0
        %817 = vmatprep.subr.mxu0 0.0
        %818 = vmatpush1.msra.mxu0 0.0
        %819 = vmatprep.subr.mxu0 0.0
        %820 = vmatpush1.msra.mxu0 0.0
        %821 = vmatprep.subr.mxu0 0.0
        %822 = vmatpush1.msra.mxu0 0.0
        %823 = vmatprep.subr.mxu0 0.0
        %824 = vmatpush1.msra.mxu0 0.0
        %825 = vmatprep.subr.mxu0 0.0
        %826 = vmatpush1.msra.mxu0 0.0
        %827 = vmatprep.subr.mxu0 0.0
        %828 = vmatpush1.msra.mxu0 0.0
        %829 = vmatprep.subr.mxu0 0.0
        %830 = vmatpush1.msra.mxu0 0.0
        %831 = vmatprep.subr.mxu0 0.0
        %832 = vmatpush1.msra.mxu0 0.0
        %833 = vmatprep.subr.mxu0 0.0
        %834 = vmatpush1.msra.mxu0 0.0
        %835 = vmatprep.subr.mxu0 0.0
        %836 = vmatpush1.msra.mxu0 0.0
        %837 = vmatprep.subr.mxu0 0.0
        %838 = vmatpush1.msra.mxu0 0.0
        %839 = vmatprep.subr.mxu0 0.0
        %840 = vmatpush1.msra.mxu0 0.0
        %841 = vmatprep.subr.mxu0 0.0
        %842 = vmatpush1.msra.mxu0 0.0
        %843 = vmatprep.subr.mxu0 0.0
        %844 = vmatpush1.msra.mxu0 0.0
        %845 = vmatprep.subr.mxu0 0.0
        %846 = vmatpush1.msra.mxu0 0.0
        %847 = vmatprep.subr.mxu0 0.0
        %848 = vmatpush1.msra.mxu0 0.0
        %849 = vmatprep.subr.mxu0 0.0
        %850 = vmatpush1.msra.mxu0 0.0
        %851 = vmatprep.subr.mxu0 0.0
        %852 = vmatpush1.msra.mxu0 0.0
        %853 = vmatprep.subr.mxu0 0.0
        %854 = vmatpush1.msra.mxu0 0.0
        %855 = vmatprep.subr.mxu0 0.0
        %856 = vmatpush1.msra.mxu0 0.0
        %857 = vmatprep.subr.mxu0 0.0
        %858 = vmatpush1.msra.mxu0 0.0
        %859 = vmatprep.subr.mxu0 0.0
        %860 = vmatpush1.msra.mxu0 0.0
        %861 = vmatprep.subr.mxu0 0.0
        %862 = vmatpush1.msra.mxu0 0.0
        %863 = vmatprep.subr.mxu0 0.0
        %864 = vmatpush1.msra.mxu0 0.0
        %865 = vmatprep.mubr.f32.mxu0 0.0
        %866 = vmatmul.mubr.f32.gmra.mrb[0].mxu0 %v799
        %v867 = vpop.f32.mrb[0].mxu0
        %v868 = vadd.f32 %v796, %v867
        %v869 = vpop.f32.mrb[0].mxu0
        %870 = vdwg.mxu0
        %872 = vrot.lane.b32.xlu0 %v700, 120
        %v873 = vpop.permute.xlu0 %872
        %875 = vrot.lane.b32.xlu0 %v700, 112
        %v876 = vpop.permute.xlu0 %875
        %878 = vrot.lane.b32.xlu0 %v700, 104
        %v879 = vpop.permute.xlu0 %878
        %v881 = vcombine.low %v700, %v876
        %v882 = vcombine.high %v700, %v876
        %v884 = vunpack.c.l.s4 1983009808
        %v885 = vunpack.c.0.s8 %v884
        %v886 = vlaneseq
        %v887 = vshrl.u32 %v886, 7
        %v888 = vsub.s32 %v885, %v887
        %v889 = vrot.slane %v881, %v888
        %v891 = vunpack.c.l.s4 1983009808
        %v892 = vunpack.c.0.s8 %v891
        %v893 = vlaneseq
        %v894 = vshrl.u32 %v893, 7
        %v895 = vsub.s32 %v892, %v894
        %v896 = vrot.slane %v882, %v895
        %v897 = vcombine.low %v873, %v879
        %v898 = vcombine.high %v873, %v879
        %v900 = vunpack.c.l.s4 1983009808
        %v901 = vunpack.c.0.s8 %v900
        %v902 = vlaneseq
        %v903 = vshrl.u32 %v902, 7
        %v904 = vsub.s32 %v901, %v903
        %v905 = vrot.slane %v897, %v904
        %v907 = vunpack.c.l.s4 1983009808
        %v908 = vunpack.c.0.s8 %v907
        %v909 = vlaneseq
        %v910 = vshrl.u32 %v909, 7
        %v911 = vsub.s32 %v908, %v910
        %v912 = vrot.slane %v898, %v911
        %v913 = vcombine.low %v889, %v905
        %v914 = vcombine.high %v889, %v905
        %v916 = vunpack.c.l.s4 1934713408
        %v917 = vunpack.c.0.s8 %v916
        %v918 = vlaneseq
        %v919 = vshrl.u32 %v918, 7
        %v920 = vsub.s32 %v917, %v919
        %v921 = vrot.slane %v913, %v920
        %v923 = vunpack.c.l.s4 1934713408
        %v924 = vunpack.c.0.s8 %v923
        %v925 = vlaneseq
        %v926 = vshrl.u32 %v925, 7
        %v927 = vsub.s32 %v924, %v926
        %v928 = vrot.slane %v914, %v927
        %v929 = vcombine.low %v896, %v912
        %v930 = vcombine.high %v896, %v912
        %v932 = vunpack.c.l.s4 1934713408
        %v933 = vunpack.c.0.s8 %v932
        %v934 = vlaneseq
        %v935 = vshrl.u32 %v934, 7
        %v936 = vsub.s32 %v933, %v935
        %v937 = vrot.slane %v929, %v936
        %v939 = vunpack.c.l.s4 1934713408
        %v940 = vunpack.c.0.s8 %v939
        %v941 = vlaneseq
        %v942 = vshrl.u32 %v941, 7
        %v943 = vsub.s32 %v940, %v942
        %v944 = vrot.slane %v930, %v943
        %v945 = vcombine.high %v921, 0.0
        %v946 = vcombine.high %v928, 0.0
        %v947 = vcombine.high %v937, 0.0
        %v948 = vcombine.high %v944, 0.0
        %v949 = vcombine.low %v921, %v928
        %v951 = vunpack.c.l.s4 1983009808
        %v952 = vunpack.c.0.s8 %v951
        %v953 = vlaneseq
        %v954 = vshrl.u32 %v953, 7
        %v955 = vsub.s32 %v952, %v954
        %v956 = vrot.slane %v949, %v955
        %v957 = vcombine.low %v945, %v946
        %v959 = vunpack.c.l.s4 1983009808
        %v960 = vunpack.c.0.s8 %v959
        %v961 = vlaneseq
        %v962 = vshrl.u32 %v961, 7
        %v963 = vsub.s32 %v960, %v962
        %v964 = vrot.slane %v957, %v963
        %v965 = vcombine.low %v937, %v944
        %v967 = vunpack.c.l.s4 1983009808
        %v968 = vunpack.c.0.s8 %v967
        %v969 = vlaneseq
        %v970 = vshrl.u32 %v969, 7
        %v971 = vsub.s32 %v968, %v970
        %v972 = vrot.slane %v965, %v971
        %v973 = vcombine.low %v947, %v948
        %v975 = vunpack.c.l.s4 1983009808
        %v976 = vunpack.c.0.s8 %v975
        %v977 = vlaneseq
        %v978 = vshrl.u32 %v977, 7
        %v979 = vsub.s32 %v976, %v978
        %v980 = vrot.slane %v973, %v979
        %v981 = vcombine.low %v956, %v964
        %v982 = vcombine.high %v956, %v964
        %v984 = vunpack.c.l.s4 1934713408
        %v985 = vunpack.c.0.s8 %v984
        %v986 = vlaneseq
        %v987 = vshrl.u32 %v986, 7
        %v988 = vsub.s32 %v985, %v987
        %v989 = vrot.slane %v981, %v988
        %v991 = vunpack.c.l.s4 1934713408
        %v992 = vunpack.c.0.s8 %v991
        %v993 = vlaneseq
        %v994 = vshrl.u32 %v993, 7
        %v995 = vsub.s32 %v992, %v994
        %v996 = vrot.slane %v982, %v995
        %v997 = vcombine.low %v972, %v980
        %v998 = vcombine.high %v972, %v980
        %v1000 = vunpack.c.l.s4 1934713408
        %v1001 = vunpack.c.0.s8 %v1000
        %v1002 = vlaneseq
        %v1003 = vshrl.u32 %v1002, 7
        %v1004 = vsub.s32 %v1001, %v1003
        %v1005 = vrot.slane %v997, %v1004
        %v1007 = vunpack.c.l.s4 1934713408
        %v1008 = vunpack.c.0.s8 %v1007
        %v1009 = vlaneseq
        %v1010 = vshrl.u32 %v1009, 7
        %v1011 = vsub.s32 %v1008, %v1010
        %v1012 = vrot.slane %v998, %v1011
        %v1013 = vcombine.low %v989, %v1005
        %v1014 = vcombine.high %v989, %v1005
        %v1015 = vcombine.low %v996, %v1012
        %v1016 = vcombine.high %v996, %v1012
        %1018 = vrot.lane.b32.xlu0 %v784, 120
        %v1019 = vpop.permute.xlu0 %1018
        %1021 = vrot.lane.b32.xlu0 %v784, 112
        %v1022 = vpop.permute.xlu0 %1021
        %1024 = vrot.lane.b32.xlu0 %v784, 104
        %v1025 = vpop.permute.xlu0 %1024
        %v1027 = vcombine.low %v784, %v1022
        %v1028 = vcombine.high %v784, %v1022
        %v1030 = vunpack.c.l.s4 1983009808
        %v1031 = vunpack.c.0.s8 %v1030
        %v1032 = vlaneseq
        %v1033 = vshrl.u32 %v1032, 7
        %v1034 = vsub.s32 %v1031, %v1033
        %v1035 = vrot.slane %v1027, %v1034
        %v1037 = vunpack.c.l.s4 1983009808
        %v1038 = vunpack.c.0.s8 %v1037
        %v1039 = vlaneseq
        %v1040 = vshrl.u32 %v1039, 7
        %v1041 = vsub.s32 %v1038, %v1040
        %v1042 = vrot.slane %v1028, %v1041
        %v1043 = vcombine.low %v1019, %v1025
        %v1044 = vcombine.high %v1019, %v1025
        %v1046 = vunpack.c.l.s4 1983009808
        %v1047 = vunpack.c.0.s8 %v1046
        %v1048 = vlaneseq
        %v1049 = vshrl.u32 %v1048, 7
        %v1050 = vsub.s32 %v1047, %v1049
        %v1051 = vrot.slane %v1043, %v1050
        %v1053 = vunpack.c.l.s4 1983009808
        %v1054 = vunpack.c.0.s8 %v1053
        %v1055 = vlaneseq
        %v1056 = vshrl.u32 %v1055, 7
        %v1057 = vsub.s32 %v1054, %v1056
        %v1058 = vrot.slane %v1044, %v1057
        %v1059 = vcombine.low %v1035, %v1051
        %v1060 = vcombine.high %v1035, %v1051
        %v1062 = vunpack.c.l.s4 1934713408
        %v1063 = vunpack.c.0.s8 %v1062
        %v1064 = vlaneseq
        %v1065 = vshrl.u32 %v1064, 7
        %v1066 = vsub.s32 %v1063, %v1065
        %v1067 = vrot.slane %v1059, %v1066
        %v1069 = vunpack.c.l.s4 1934713408
        %v1070 = vunpack.c.0.s8 %v1069
        %v1071 = vlaneseq
        %v1072 = vshrl.u32 %v1071, 7
        %v1073 = vsub.s32 %v1070, %v1072
        %v1074 = vrot.slane %v1060, %v1073
        %v1075 = vcombine.low %v1042, %v1058
        %v1076 = vcombine.high %v1042, %v1058
        %v1078 = vunpack.c.l.s4 1934713408
        %v1079 = vunpack.c.0.s8 %v1078
        %v1080 = vlaneseq
        %v1081 = vshrl.u32 %v1080, 7
        %v1082 = vsub.s32 %v1079, %v1081
        %v1083 = vrot.slane %v1075, %v1082
        %v1085 = vunpack.c.l.s4 1934713408
        %v1086 = vunpack.c.0.s8 %v1085
        %v1087 = vlaneseq
        %v1088 = vshrl.u32 %v1087, 7
        %v1089 = vsub.s32 %v1086, %v1088
        %v1090 = vrot.slane %v1076, %v1089
        %v1091 = vcombine.high %v1067, 0.0
        %v1092 = vcombine.high %v1074, 0.0
        %v1093 = vcombine.high %v1083, 0.0
        %v1094 = vcombine.high %v1090, 0.0
        %v1095 = vcombine.low %v1067, %v1074
        %v1097 = vunpack.c.l.s4 1983009808
        %v1098 = vunpack.c.0.s8 %v1097
        %v1099 = vlaneseq
        %v1100 = vshrl.u32 %v1099, 7
        %v1101 = vsub.s32 %v1098, %v1100
        %v1102 = vrot.slane %v1095, %v1101
        %v1103 = vcombine.low %v1091, %v1092
        %v1105 = vunpack.c.l.s4 1983009808
        %v1106 = vunpack.c.0.s8 %v1105
        %v1107 = vlaneseq
        %v1108 = vshrl.u32 %v1107, 7
        %v1109 = vsub.s32 %v1106, %v1108
        %v1110 = vrot.slane %v1103, %v1109
        %v1111 = vcombine.low %v1083, %v1090
        %v1113 = vunpack.c.l.s4 1983009808
        %v1114 = vunpack.c.0.s8 %v1113
        %v1115 = vlaneseq
        %v1116 = vshrl.u32 %v1115, 7
        %v1117 = vsub.s32 %v1114, %v1116
        %v1118 = vrot.slane %v1111, %v1117
        %v1119 = vcombine.low %v1093, %v1094
        %v1121 = vunpack.c.l.s4 1983009808
        %v1122 = vunpack.c.0.s8 %v1121
        %v1123 = vlaneseq
        %v1124 = vshrl.u32 %v1123, 7
        %v1125 = vsub.s32 %v1122, %v1124
        %v1126 = vrot.slane %v1119, %v1125
        %v1127 = vcombine.low %v1102, %v1110
        %v1128 = vcombine.high %v1102, %v1110
        %v1130 = vunpack.c.l.s4 1934713408
        %v1131 = vunpack.c.0.s8 %v1130
        %v1132 = vlaneseq
        %v1133 = vshrl.u32 %v1132, 7
        %v1134 = vsub.s32 %v1131, %v1133
        %v1135 = vrot.slane %v1127, %v1134
        %v1137 = vunpack.c.l.s4 1934713408
        %v1138 = vunpack.c.0.s8 %v1137
        %v1139 = vlaneseq
        %v1140 = vshrl.u32 %v1139, 7
        %v1141 = vsub.s32 %v1138, %v1140
        %v1142 = vrot.slane %v1128, %v1141
        %v1143 = vcombine.low %v1118, %v1126
        %v1144 = vcombine.high %v1118, %v1126
        %v1146 = vunpack.c.l.s4 1934713408
        %v1147 = vunpack.c.0.s8 %v1146
        %v1148 = vlaneseq
        %v1149 = vshrl.u32 %v1148, 7
        %v1150 = vsub.s32 %v1147, %v1149
        %v1151 = vrot.slane %v1143, %v1150
        %v1153 = vunpack.c.l.s4 1934713408
        %v1154 = vunpack.c.0.s8 %v1153
        %v1155 = vlaneseq
        %v1156 = vshrl.u32 %v1155, 7
        %v1157 = vsub.s32 %v1154, %v1156
        %v1158 = vrot.slane %v1144, %v1157
        %v1159 = vcombine.low %v1135, %v1151
        %v1160 = vcombine.high %v1135, %v1151
        %v1161 = vcombine.low %v1142, %v1158
        %v1162 = vcombine.high %v1142, %v1158
        %1164 = vrot.lane.b32.xlu0 %v868, 120
        %v1165 = vpop.permute.xlu0 %1164
        %1167 = vrot.lane.b32.xlu0 %v868, 112
        %v1168 = vpop.permute.xlu0 %1167
        %1170 = vrot.lane.b32.xlu0 %v868, 104
        %v1171 = vpop.permute.xlu0 %1170
        %v1173 = vcombine.low %v868, %v1168
        %v1174 = vcombine.high %v868, %v1168
        %v1176 = vunpack.c.l.s4 1983009808
        %v1177 = vunpack.c.0.s8 %v1176
        %v1178 = vlaneseq
        %v1179 = vshrl.u32 %v1178, 7
        %v1180 = vsub.s32 %v1177, %v1179
        %v1181 = vrot.slane %v1173, %v1180
        %v1183 = vunpack.c.l.s4 1983009808
        %v1184 = vunpack.c.0.s8 %v1183
        %v1185 = vlaneseq
        %v1186 = vshrl.u32 %v1185, 7
        %v1187 = vsub.s32 %v1184, %v1186
        %v1188 = vrot.slane %v1174, %v1187
        %v1189 = vcombine.low %v1165, %v1171
        %v1190 = vcombine.high %v1165, %v1171
        %v1192 = vunpack.c.l.s4 1983009808
        %v1193 = vunpack.c.0.s8 %v1192
        %v1194 = vlaneseq
        %v1195 = vshrl.u32 %v1194, 7
        %v1196 = vsub.s32 %v1193, %v1195
        %v1197 = vrot.slane %v1189, %v1196
        %v1199 = vunpack.c.l.s4 1983009808
        %v1200 = vunpack.c.0.s8 %v1199
        %v1201 = vlaneseq
        %v1202 = vshrl.u32 %v1201, 7
        %v1203 = vsub.s32 %v1200, %v1202
        %v1204 = vrot.slane %v1190, %v1203
        %v1205 = vcombine.low %v1181, %v1197
        %v1206 = vcombine.high %v1181, %v1197
        %v1208 = vunpack.c.l.s4 1934713408
        %v1209 = vunpack.c.0.s8 %v1208
        %v1210 = vlaneseq
        %v1211 = vshrl.u32 %v1210, 7
        %v1212 = vsub.s32 %v1209, %v1211
        %v1213 = vrot.slane %v1205, %v1212
        %v1215 = vunpack.c.l.s4 1934713408
        %v1216 = vunpack.c.0.s8 %v1215
        %v1217 = vlaneseq
        %v1218 = vshrl.u32 %v1217, 7
        %v1219 = vsub.s32 %v1216, %v1218
        %v1220 = vrot.slane %v1206, %v1219
        %v1221 = vcombine.low %v1188, %v1204
        %v1222 = vcombine.high %v1188, %v1204
        %v1224 = vunpack.c.l.s4 1934713408
        %v1225 = vunpack.c.0.s8 %v1224
        %v1226 = vlaneseq
        %v1227 = vshrl.u32 %v1226, 7
        %v1228 = vsub.s32 %v1225, %v1227
        %v1229 = vrot.slane %v1221, %v1228
        %v1231 = vunpack.c.l.s4 1934713408
        %v1232 = vunpack.c.0.s8 %v1231
        %v1233 = vlaneseq
        %v1234 = vshrl.u32 %v1233, 7
        %v1235 = vsub.s32 %v1232, %v1234
        %v1236 = vrot.slane %v1222, %v1235
        %v1237 = vcombine.high %v1213, 0.0
        %v1238 = vcombine.high %v1220, 0.0
        %v1239 = vcombine.high %v1229, 0.0
        %v1240 = vcombine.high %v1236, 0.0
        %v1241 = vcombine.low %v1213, %v1220
        %v1243 = vunpack.c.l.s4 1983009808
        %v1244 = vunpack.c.0.s8 %v1243
        %v1245 = vlaneseq
        %v1246 = vshrl.u32 %v1245, 7
        %v1247 = vsub.s32 %v1244, %v1246
        %v1248 = vrot.slane %v1241, %v1247
        %v1249 = vcombine.low %v1237, %v1238
        %v1251 = vunpack.c.l.s4 1983009808
        %v1252 = vunpack.c.0.s8 %v1251
        %v1253 = vlaneseq
        %v1254 = vshrl.u32 %v1253, 7
        %v1255 = vsub.s32 %v1252, %v1254
        %v1256 = vrot.slane %v1249, %v1255
        %v1257 = vcombine.low %v1229, %v1236
        %v1259 = vunpack.c.l.s4 1983009808
        %v1260 = vunpack.c.0.s8 %v1259
        %v1261 = vlaneseq
        %v1262 = vshrl.u32 %v1261, 7
        %v1263 = vsub.s32 %v1260, %v1262
        %v1264 = vrot.slane %v1257, %v1263
        %v1265 = vcombine.low %v1239, %v1240
        %v1267 = vunpack.c.l.s4 1983009808
        %v1268 = vunpack.c.0.s8 %v1267
        %v1269 = vlaneseq
        %v1270 = vshrl.u32 %v1269, 7
        %v1271 = vsub.s32 %v1268, %v1270
        %v1272 = vrot.slane %v1265, %v1271
        %v1273 = vcombine.low %v1248, %v1256
        %v1274 = vcombine.high %v1248, %v1256
        %v1276 = vunpack.c.l.s4 1934713408
        %v1277 = vunpack.c.0.s8 %v1276
        %v1278 = vlaneseq
        %v1279 = vshrl.u32 %v1278, 7
        %v1280 = vsub.s32 %v1277, %v1279
        %v1281 = vrot.slane %v1273, %v1280
        %v1283 = vunpack.c.l.s4 1934713408
        %v1284 = vunpack.c.0.s8 %v1283
        %v1285 = vlaneseq
        %v1286 = vshrl.u32 %v1285, 7
        %v1287 = vsub.s32 %v1284, %v1286
        %v1288 = vrot.slane %v1274, %v1287
        %v1289 = vcombine.low %v1264, %v1272
        %v1290 = vcombine.high %v1264, %v1272
        %v1292 = vunpack.c.l.s4 1934713408
        %v1293 = vunpack.c.0.s8 %v1292
        %v1294 = vlaneseq
        %v1295 = vshrl.u32 %v1294, 7
        %v1296 = vsub.s32 %v1293, %v1295
        %v1297 = vrot.slane %v1289, %v1296
        %v1299 = vunpack.c.l.s4 1934713408
        %v1300 = vunpack.c.0.s8 %v1299
        %v1301 = vlaneseq
        %v1302 = vshrl.u32 %v1301, 7
        %v1303 = vsub.s32 %v1300, %v1302
        %v1304 = vrot.slane %v1290, %v1303
        %v1305 = vcombine.low %v1281, %v1297
        %v1306 = vcombine.high %v1281, %v1297
        %v1307 = vcombine.low %v1288, %v1304
        %v1308 = vcombine.high %v1288, %v1304
        %v1309 = vld [vmem:[%s614] sm:$0x1]
        %vm1310 = vcmp.eq.s32.totalorder %v1309, 0
        %v1311 = vsel %vm1310, -1e+10, 0.0
        %v1313 = vlaneseq
        %v1314 = vshrl.u32 %v1313, 7
        %v1315 = vsub.s32 0, %v1314
        %v1316 = vrot.slane %v1311, %v1315
        %vm1318 = vcmask 64512
        %v1320 = vsel %vm1318, %v1013, 0
        %v1323 = vsel %vm1318, %v1159, 0
        %1325 = vmatprep.subr.mxu0 0.0
        %1326 = vmatpush1.xpose.msra.mxu0 %v1323
        %1327 = vmatprep.subr.mxu0 0.0
        %1328 = vmatpush1.xpose.msra.mxu0 0.0
        %1329 = vmatprep.subr.mxu0 0.0
        %1330 = vmatpush1.xpose.msra.mxu0 0.0
        %1331 = vmatprep.subr.mxu0 0.0
        %1332 = vmatpush1.xpose.msra.mxu0 0.0
        %1333 = vmatprep.subr.mxu0 0.0
        %1334 = vmatpush1.xpose.msra.mxu0 0.0
        %1335 = vmatprep.subr.mxu0 0.0
        %1336 = vmatpush1.xpose.msra.mxu0 0.0
        %1337 = vmatprep.subr.mxu0 0.0
        %1338 = vmatpush1.xpose.msra.mxu0 0.0
        %1339 = vmatprep.subr.mxu0 0.0
        %1340 = vmatpush1.xpose.msra.mxu0 0.0
        %1341 = vmatprep.subr.mxu0 0.0
        %1342 = vmatpush1.xpose.msra.mxu0 0.0
        %1343 = vmatprep.subr.mxu0 0.0
        %1344 = vmatpush1.xpose.msra.mxu0 0.0
        %1345 = vmatprep.subr.mxu0 0.0
        %1346 = vmatpush1.xpose.msra.mxu0 0.0
        %1347 = vmatprep.subr.mxu0 0.0
        %1348 = vmatpush1.xpose.msra.mxu0 0.0
        %1349 = vmatprep.subr.mxu0 0.0
        %1350 = vmatpush1.xpose.msra.mxu0 0.0
        %1351 = vmatprep.subr.mxu0 0.0
        %1352 = vmatpush1.xpose.msra.mxu0 0.0
        %1353 = vmatprep.subr.mxu0 0.0
        %1354 = vmatpush1.xpose.msra.mxu0 0.0
        %1355 = vmatprep.subr.mxu0 0.0
        %1356 = vmatpush1.xpose.msra.mxu0 0.0
        %1357 = vmatprep.subr.mxu0 0.0
        %1358 = vmatpush1.xpose.msra.mxu0 0.0
        %1359 = vmatprep.subr.mxu0 0.0
        %1360 = vmatpush1.xpose.msra.mxu0 0.0
        %1361 = vmatprep.subr.mxu0 0.0
        %1362 = vmatpush1.xpose.msra.mxu0 0.0
        %1363 = vmatprep.subr.mxu0 0.0
        %1364 = vmatpush1.xpose.msra.mxu0 0.0
        %1365 = vmatprep.subr.mxu0 0.0
        %1366 = vmatpush1.xpose.msra.mxu0 0.0
        %1367 = vmatprep.subr.mxu0 0.0
        %1368 = vmatpush1.xpose.msra.mxu0 0.0
        %1369 = vmatprep.subr.mxu0 0.0
        %1370 = vmatpush1.xpose.msra.mxu0 0.0
        %1371 = vmatprep.subr.mxu0 0.0
        %1372 = vmatpush1.xpose.msra.mxu0 0.0
        %1373 = vmatprep.subr.mxu0 0.0
        %1374 = vmatpush1.xpose.msra.mxu0 0.0
        %1375 = vmatprep.subr.mxu0 0.0
        %1376 = vmatpush1.xpose.msra.mxu0 0.0
        %1377 = vmatprep.subr.mxu0 0.0
        %1378 = vmatpush1.xpose.msra.mxu0 0.0
        %1379 = vmatprep.subr.mxu0 0.0
        %1380 = vmatpush1.xpose.msra.mxu0 0.0
        %1381 = vmatprep.subr.mxu0 0.0
        %1382 = vmatpush1.xpose.msra.mxu0 0.0
        %1383 = vmatprep.subr.mxu0 0.0
        %1384 = vmatpush1.xpose.msra.mxu0 0.0
        %1385 = vmatprep.subr.mxu0 0.0
        %1386 = vmatpush1.xpose.msra.mxu0 0.0
        %1387 = vmatprep.subr.mxu0 0.0
        %1388 = vmatpush1.xpose.msra.mxu0 0.0
        %1389 = vmatprep.mubr.f32.mxu0 0.0
        %1390 = vmatmul.mubr.f32.gmra.mrb[0].mxu0 %v1320
        %v1391 = vpop.f32.mrb[0].mxu0
        %v1392 = vadd.f32 %v1316, %v1391
        %v1393 = vpop.f32.mrb[0].mxu0
        %1394 = vdwg.mxu0
        %v1396 = vsel %vm1318, %v1014, 0
        %v1399 = vsel %vm1318, %v1160, 0
        %1401 = vmatprep.subr.mxu0 0.0
        %1402 = vmatpush1.xpose.msra.mxu0 %v1399
        %1403 = vmatprep.subr.mxu0 0.0
        %1404 = vmatpush1.xpose.msra.mxu0 0.0
        %1405 = vmatprep.subr.mxu0 0.0
        %1406 = vmatpush1.xpose.msra.mxu0 0.0
        %1407 = vmatprep.subr.mxu0 0.0
        %1408 = vmatpush1.xpose.msra.mxu0 0.0
        %1409 = vmatprep.subr.mxu0 0.0
        %1410 = vmatpush1.xpose.msra.mxu0 0.0
        %1411 = vmatprep.subr.mxu0 0.0
        %1412 = vmatpush1.xpose.msra.mxu0 0.0
        %1413 = vmatprep.subr.mxu0 0.0
        %1414 = vmatpush1.xpose.msra.mxu0 0.0
        %1415 = vmatprep.subr.mxu0 0.0
        %1416 = vmatpush1.xpose.msra.mxu0 0.0
        %1417 = vmatprep.subr.mxu0 0.0
        %1418 = vmatpush1.xpose.msra.mxu0 0.0
        %1419 = vmatprep.subr.mxu0 0.0
        %1420 = vmatpush1.xpose.msra.mxu0 0.0
        %1421 = vmatprep.subr.mxu0 0.0
        %1422 = vmatpush1.xpose.msra.mxu0 0.0
        %1423 = vmatprep.subr.mxu0 0.0
        %1424 = vmatpush1.xpose.msra.mxu0 0.0
        %1425 = vmatprep.subr.mxu0 0.0
        %1426 = vmatpush1.xpose.msra.mxu0 0.0
        %1427 = vmatprep.subr.mxu0 0.0
        %1428 = vmatpush1.xpose.msra.mxu0 0.0
        %1429 = vmatprep.subr.mxu0 0.0
        %1430 = vmatpush1.xpose.msra.mxu0 0.0
        %1431 = vmatprep.subr.mxu0 0.0
        %1432 = vmatpush1.xpose.msra.mxu0 0.0
        %1433 = vmatprep.subr.mxu0 0.0
        %1434 = vmatpush1.xpose.msra.mxu0 0.0
        %1435 = vmatprep.subr.mxu0 0.0
        %1436 = vmatpush1.xpose.msra.mxu0 0.0
        %1437 = vmatprep.subr.mxu0 0.0
        %1438 = vmatpush1.xpose.msra.mxu0 0.0
        %1439 = vmatprep.subr.mxu0 0.0
        %1440 = vmatpush1.xpose.msra.mxu0 0.0
        %1441 = vmatprep.subr.mxu0 0.0
        %1442 = vmatpush1.xpose.msra.mxu0 0.0
        %1443 = vmatprep.subr.mxu0 0.0
        %1444 = vmatpush1.xpose.msra.mxu0 0.0
        %1445 = vmatprep.subr.mxu0 0.0
        %1446 = vmatpush1.xpose.msra.mxu0 0.0
        %1447 = vmatprep.subr.mxu0 0.0
        %1448 = vmatpush1.xpose.msra.mxu0 0.0
        %1449 = vmatprep.subr.mxu0 0.0
        %1450 = vmatpush1.xpose.msra.mxu0 0.0
        %1451 = vmatprep.subr.mxu0 0.0
        %1452 = vmatpush1.xpose.msra.mxu0 0.0
        %1453 = vmatprep.subr.mxu0 0.0
        %1454 = vmatpush1.xpose.msra.mxu0 0.0
        %1455 = vmatprep.subr.mxu0 0.0
        %1456 = vmatpush1.xpose.msra.mxu0 0.0
        %1457 = vmatprep.subr.mxu0 0.0
        %1458 = vmatpush1.xpose.msra.mxu0 0.0
        %1459 = vmatprep.subr.mxu0 0.0
        %1460 = vmatpush1.xpose.msra.mxu0 0.0
        %1461 = vmatprep.subr.mxu0 0.0
        %1462 = vmatpush1.xpose.msra.mxu0 0.0
        %1463 = vmatprep.subr.mxu0 0.0
        %1464 = vmatpush1.xpose.msra.mxu0 0.0
        %1465 = vmatprep.mubr.f32.mxu0 0.0
        %1466 = vmatmul.mubr.f32.gmra.mrb[0].mxu0 %v1396
        %v1467 = vpop.f32.mrb[0].mxu0
        %v1468 = vadd.f32 %v1316, %v1467
        %v1469 = vpop.f32.mrb[0].mxu0
        %1470 = vdwg.mxu0
        %v1472 = vsel %vm1318, %v1015, 0
        %v1475 = vsel %vm1318, %v1161, 0
        %1477 = vmatprep.subr.mxu0 0.0
        %1478 = vmatpush1.xpose.msra.mxu0 %v1475
        %1479 = vmatprep.subr.mxu0 0.0
        %1480 = vmatpush1.xpose.msra.mxu0 0.0
        %1481 = vmatprep.subr.mxu0 0.0
        %1482 = vmatpush1.xpose.msra.mxu0 0.0
        %1483 = vmatprep.subr.mxu0 0.0
        %1484 = vmatpush1.xpose.msra.mxu0 0.0
        %1485 = vmatprep.subr.mxu0 0.0
        %1486 = vmatpush1.xpose.msra.mxu0 0.0
        %1487 = vmatprep.subr.mxu0 0.0
        %1488 = vmatpush1.xpose.msra.mxu0 0.0
        %1489 = vmatprep.subr.mxu0 0.0
        %1490 = vmatpush1.xpose.msra.mxu0 0.0
        %1491 = vmatprep.subr.mxu0 0.0
        %1492 = vmatpush1.xpose.msra.mxu0 0.0
        %1493 = vmatprep.subr.mxu0 0.0
        %1494 = vmatpush1.xpose.msra.mxu0 0.0
        %1495 = vmatprep.subr.mxu0 0.0
        %1496 = vmatpush1.xpose.msra.mxu0 0.0
        %1497 = vmatprep.subr.mxu0 0.0
        %1498 = vmatpush1.xpose.msra.mxu0 0.0
        %1499 = vmatprep.subr.mxu0 0.0
        %1500 = vmatpush1.xpose.msra.mxu0 0.0
        %1501 = vmatprep.subr.mxu0 0.0
        %1502 = vmatpush1.xpose.msra.mxu0 0.0
        %1503 = vmatprep.subr.mxu0 0.0
        %1504 = vmatpush1.xpose.msra.mxu0 0.0
        %1505 = vmatprep.subr.mxu0 0.0
        %1506 = vmatpush1.xpose.msra.mxu0 0.0
        %1507 = vmatprep.subr.mxu0 0.0
        %1508 = vmatpush1.xpose.msra.mxu0 0.0
        %1509 = vmatprep.subr.mxu0 0.0
        %1510 = vmatpush1.xpose.msra.mxu0 0.0
        %1511 = vmatprep.subr.mxu0 0.0
        %1512 = vmatpush1.xpose.msra.mxu0 0.0
        %1513 = vmatprep.subr.mxu0 0.0
        %1514 = vmatpush1.xpose.msra.mxu0 0.0
        %1515 = vmatprep.subr.mxu0 0.0
        %1516 = vmatpush1.xpose.msra.mxu0 0.0
        %1517 = vmatprep.subr.mxu0 0.0
        %1518 = vmatpush1.xpose.msra.mxu0 0.0
        %1519 = vmatprep.subr.mxu0 0.0
        %1520 = vmatpush1.xpose.msra.mxu0 0.0
        %1521 = vmatprep.subr.mxu0 0.0
        %1522 = vmatpush1.xpose.msra.mxu0 0.0
        %1523 = vmatprep.subr.mxu0 0.0
        %1524 = vmatpush1.xpose.msra.mxu0 0.0
        %1525 = vmatprep.subr.mxu0 0.0
        %1526 = vmatpush1.xpose.msra.mxu0 0.0
        %1527 = vmatprep.subr.mxu0 0.0
        %1528 = vmatpush1.xpose.msra.mxu0 0.0
        %1529 = vmatprep.subr.mxu0 0.0
        %1530 = vmatpush1.xpose.msra.mxu0 0.0
        %1531 = vmatprep.subr.mxu0 0.0
        %1532 = vmatpush1.xpose.msra.mxu0 0.0
        %1533 = vmatprep.subr.mxu0 0.0
        %1534 = vmatpush1.xpose.msra.mxu0 0.0
        %1535 = vmatprep.subr.mxu0 0.0
        %1536 = vmatpush1.xpose.msra.mxu0 0.0
        %1537 = vmatprep.subr.mxu0 0.0
        %1538 = vmatpush1.xpose.msra.mxu0 0.0
        %1539 = vmatprep.subr.mxu0 0.0
        %1540 = vmatpush1.xpose.msra.mxu0 0.0
        %1541 = vmatprep.mubr.f32.mxu0 0.0
        %1542 = vmatmul.mubr.f32.gmra.mrb[0].mxu0 %v1472
        %v1543 = vpop.f32.mrb[0].mxu0
        %v1544 = vadd.f32 %v1316, %v1543
        %v1545 = vpop.f32.mrb[0].mxu0
        %1546 = vdwg.mxu0
        %v1548 = vsel %vm1318, %v1016, 0
        %v1551 = vsel %vm1318, %v1162, 0
        %1553 = vmatprep.subr.mxu0 0.0
        %1554 = vmatpush1.xpose.msra.mxu0 %v1551
        %1555 = vmatprep.subr.mxu0 0.0
        %1556 = vmatpush1.xpose.msra.mxu0 0.0
        %1557 = vmatprep.subr.mxu0 0.0
        %1558 = vmatpush1.xpose.msra.mxu0 0.0
        %1559 = vmatprep.subr.mxu0 0.0
        %1560 = vmatpush1.xpose.msra.mxu0 0.0
        %1561 = vmatprep.subr.mxu0 0.0
        %1562 = vmatpush1.xpose.msra.mxu0 0.0
        %1563 = vmatprep.subr.mxu0 0.0
        %1564 = vmatpush1.xpose.msra.mxu0 0.0
        %1565 = vmatprep.subr.mxu0 0.0
        %1566 = vmatpush1.xpose.msra.mxu0 0.0
        %1567 = vmatprep.subr.mxu0 0.0
        %1568 = vmatpush1.xpose.msra.mxu0 0.0
        %1569 = vmatprep.subr.mxu0 0.0
        %1570 = vmatpush1.xpose.msra.mxu0 0.0
        %1571 = vmatprep.subr.mxu0 0.0
        %1572 = vmatpush1.xpose.msra.mxu0 0.0
        %1573 = vmatprep.subr.mxu0 0.0
        %1574 = vmatpush1.xpose.msra.mxu0 0.0
        %1575 = vmatprep.subr.mxu0 0.0
        %1576 = vmatpush1.xpose.msra.mxu0 0.0
        %1577 = vmatprep.subr.mxu0 0.0
        %1578 = vmatpush1.xpose.msra.mxu0 0.0
        %1579 = vmatprep.subr.mxu0 0.0
        %1580 = vmatpush1.xpose.msra.mxu0 0.0
        %1581 = vmatprep.subr.mxu0 0.0
        %1582 = vmatpush1.xpose.msra.mxu0 0.0
        %1583 = vmatprep.subr.mxu0 0.0
        %1584 = vmatpush1.xpose.msra.mxu0 0.0
        %1585 = vmatprep.subr.mxu0 0.0
        %1586 = vmatpush1.xpose.msra.mxu0 0.0
        %1587 = vmatprep.subr.mxu0 0.0
        %1588 = vmatpush1.xpose.msra.mxu0 0.0
        %1589 = vmatprep.subr.mxu0 0.0
        %1590 = vmatpush1.xpose.msra.mxu0 0.0
        %1591 = vmatprep.subr.mxu0 0.0
        %1592 = vmatpush1.xpose.msra.mxu0 0.0
        %1593 = vmatprep.subr.mxu0 0.0
        %1594 = vmatpush1.xpose.msra.mxu0 0.0
        %1595 = vmatprep.subr.mxu0 0.0
        %1596 = vmatpush1.xpose.msra.mxu0 0.0
        %1597 = vmatprep.subr.mxu0 0.0
        %1598 = vmatpush1.xpose.msra.mxu0 0.0
        %1599 = vmatprep.subr.mxu0 0.0
        %1600 = vmatpush1.xpose.msra.mxu0 0.0
        %1601 = vmatprep.subr.mxu0 0.0
        %1602 = vmatpush1.xpose.msra.mxu0 0.0
        %1603 = vmatprep.subr.mxu0 0.0
        %1604 = vmatpush1.xpose.msra.mxu0 0.0
        %1605 = vmatprep.subr.mxu0 0.0
        %1606 = vmatpush1.xpose.msra.mxu0 0.0
        %1607 = vmatprep.subr.mxu0 0.0
        %1608 = vmatpush1.xpose.msra.mxu0 0.0
        %1609 = vmatprep.subr.mxu0 0.0
        %1610 = vmatpush1.xpose.msra.mxu0 0.0
        %1611 = vmatprep.subr.mxu0 0.0
        %1612 = vmatpush1.xpose.msra.mxu0 0.0
        %1613 = vmatprep.subr.mxu0 0.0
        %1614 = vmatpush1.xpose.msra.mxu0 0.0
        %1615 = vmatprep.subr.mxu0 0.0
        %1616 = vmatpush1.xpose.msra.mxu0 0.0
        %1617 = vmatprep.mubr.f32.mxu0 0.0
        %1618 = vmatmul.mubr.f32.gmra.mrb[0].mxu0 %v1548
        %v1619 = vpop.f32.mrb[0].mxu0
        %v1620 = vadd.f32 %v1316, %v1619
        %v1621 = vpop.f32.mrb[0].mxu0
        %1622 = vdwg.mxu0
        %v1623 = vsel %vm1318, %v1392, -inf
        %1624 = vmax.xlane.f32.xlu0 %v1623
        %v1625 = vpop.xlane.xlu0 %1624
        %v1626 = vsel %vm1318, %v1468, -inf
        %1627 = vmax.xlane.f32.xlu0 %v1626
        %v1628 = vpop.xlane.xlu0 %1627
        %v1629 = vsel %vm1318, %v1544, -inf
        %1630 = vmax.xlane.f32.xlu0 %v1629
        %v1631 = vpop.xlane.xlu0 %1630
        %v1632 = vsel %vm1318, %v1620, -inf
        %1633 = vmax.xlane.f32.xlu0 %v1632
        %v1634 = vpop.xlane.xlu0 %1633
        %v1635 = vsub.f32 %v1392, %v1625
        %v1636 = vsub.f32 %v1468, %v1628
        %v1637 = vsub.f32 %v1544, %v1631
        %v1638 = vsub.f32 %v1620, %v1634
        %v1639 = vmul.f32 %v1635, 1.442695
        %v1640 = vpow.pop %v1639
        %v1641 = vmul.f32 %v1636, 1.442695
        %v1642 = vpow.pop %v1641
        %v1643 = vmul.f32 %v1637, 1.442695
        %v1644 = vpow.pop %v1643
        %v1645 = vmul.f32 %v1638, 1.442695
        %v1646 = vpow.pop %v1645
        %v1647 = vsel %vm1318, %v1640, 0.0
        %1648 = vadd.xlane.f32.xlu0 %v1647
        %v1649 = vpop.xlane.xlu0 %1648
        %v1650 = vsel %vm1318, %v1642, 0.0
        %1651 = vadd.xlane.f32.xlu0 %v1650
        %v1652 = vpop.xlane.xlu0 %1651
        %v1653 = vsel %vm1318, %v1644, 0.0
        %1654 = vadd.xlane.f32.xlu0 %v1653
        %v1655 = vpop.xlane.xlu0 %1654
        %v1656 = vsel %vm1318, %v1646, 0.0
        %1657 = vadd.xlane.f32.xlu0 %v1656
        %v1658 = vpop.xlane.xlu0 %1657
        %v1659 = vrcp.pop %v1649
        %v1660 = vrcp.pop %v1652
        %v1661 = vrcp.pop %v1655
        %v1662 = vrcp.pop %v1658
        %v1663 = vmul.f32 %v1640, %v1659
        %v1664 = vmul.f32 %v1642, %v1660
        %v1665 = vmul.f32 %v1644, %v1661
        %v1666 = vmul.f32 %v1646, %v1662
        %1667 = vst.msk [vmem:[%s611] sm:$0xff] %vm1318, %v1663
        %1668 = vst.msk [vmem:[%s611 + $0x8] sm:$0xff] %vm1318, %v1664
        %1669 = vst.msk [vmem:[%s611 + $0x10] sm:$0xff] %vm1318, %v1665
        %1670 = vst.msk [vmem:[%s611 + $0x18] sm:$0xff] %vm1318, %v1666
        %v1672 = vsel %vm1318, %v1640, 0
        %1674 = vmatprep.subr.mxu0 0.0
        %1675 = vmatpush1.msra.mxu0 %v1305
        %1676 = vmatprep.subr.mxu0 0.0
        %1677 = vmatpush1.msra.mxu0 0.0
        %1678 = vmatprep.subr.mxu0 0.0
        %1679 = vmatpush1.msra.mxu0 0.0
        %1680 = vmatprep.subr.mxu0 0.0
        %1681 = vmatpush1.msra.mxu0 0.0
        %1682 = vmatprep.subr.mxu0 0.0
        %1683 = vmatpush1.msra.mxu0 0.0
        %1684 = vmatprep.subr.mxu0 0.0
        %1685 = vmatpush1.msra.mxu0 0.0
        %1686 = vmatprep.subr.mxu0 0.0
        %1687 = vmatpush1.msra.mxu0 0.0
        %1688 = vmatprep.subr.mxu0 0.0
        %1689 = vmatpush1.msra.mxu0 0.0
        %1690 = vmatprep.subr.mxu0 0.0
        %1691 = vmatpush1.msra.mxu0 0.0
        %1692 = vmatprep.subr.mxu0 0.0
        %1693 = vmatpush1.msra.mxu0 0.0
        %1694 = vmatprep.subr.mxu0 0.0
        %1695 = vmatpush1.msra.mxu0 0.0
        %1696 = vmatprep.subr.mxu0 0.0
        %1697 = vmatpush1.msra.mxu0 0.0
        %1698 = vmatprep.subr.mxu0 0.0
        %1699 = vmatpush1.msra.mxu0 0.0
        %1700 = vmatprep.subr.mxu0 0.0
        %1701 = vmatpush1.msra.mxu0 0.0
        %1702 = vmatprep.subr.mxu0 0.0
        %1703 = vmatpush1.msra.mxu0 0.0
        %1704 = vmatprep.subr.mxu0 0.0
        %1705 = vmatpush1.msra.mxu0 0.0
        %1706 = vmatprep.subr.mxu0 0.0
        %1707 = vmatpush1.msra.mxu0 0.0
        %1708 = vmatprep.subr.mxu0 0.0
        %1709 = vmatpush1.msra.mxu0 0.0
        %1710 = vmatprep.subr.mxu0 0.0
        %1711 = vmatpush1.msra.mxu0 0.0
        %1712 = vmatprep.subr.mxu0 0.0
        %1713 = vmatpush1.msra.mxu0 0.0
        %1714 = vmatprep.subr.mxu0 0.0
        %1715 = vmatpush1.msra.mxu0 0.0
        %1716 = vmatprep.subr.mxu0 0.0
        %1717 = vmatpush1.msra.mxu0 0.0
        %1718 = vmatprep.subr.mxu0 0.0
        %1719 = vmatpush1.msra.mxu0 0.0
        %1720 = vmatprep.subr.mxu0 0.0
        %1721 = vmatpush1.msra.mxu0 0.0
        %1722 = vmatprep.subr.mxu0 0.0
        %1723 = vmatpush1.msra.mxu0 0.0
        %1724 = vmatprep.subr.mxu0 0.0
        %1725 = vmatpush1.msra.mxu0 0.0
        %1726 = vmatprep.subr.mxu0 0.0
        %1727 = vmatpush1.msra.mxu0 0.0
        %1728 = vmatprep.subr.mxu0 0.0
        %1729 = vmatpush1.msra.mxu0 0.0
        %1730 = vmatprep.subr.mxu0 0.0
        %1731 = vmatpush1.msra.mxu0 0.0
        %1732 = vmatprep.subr.mxu0 0.0
        %1733 = vmatpush1.msra.mxu0 0.0
        %1734 = vmatprep.subr.mxu0 0.0
        %1735 = vmatpush1.msra.mxu0 0.0
        %1736 = vmatprep.subr.mxu0 0.0
        %1737 = vmatpush1.msra.mxu0 0.0
        %1738 = vmatprep.mubr.f32.mxu0 0.0
        %1739 = vmatmul.mubr.f32.gmra.mrb[0].mxu0 %v1672
        %v1740 = vpop.f32.mrb[0].mxu0
        %v1741 = vadd.f32 0.0, %v1740
        %v1742 = vpop.f32.mrb[0].mxu0
        %1743 = vdwg.mxu0
        %v1745 = vsel %vm1318, %v1642, 0
        %1747 = vmatprep.subr.mxu0 0.0
        %1748 = vmatpush1.msra.mxu0 %v1306
        %1749 = vmatprep.subr.mxu0 0.0
        %1750 = vmatpush1.msra.mxu0 0.0
        %1751 = vmatprep.subr.mxu0 0.0
        %1752 = vmatpush1.msra.mxu0 0.0
        %1753 = vmatprep.subr.mxu0 0.0
        %1754 = vmatpush1.msra.mxu0 0.0
        %1755 = vmatprep.subr.mxu0 0.0
        %1756 = vmatpush1.msra.mxu0 0.0
        %1757 = vmatprep.subr.mxu0 0.0
        %1758 = vmatpush1.msra.mxu0 0.0
        %1759 = vmatprep.subr.mxu0 0.0
        %1760 = vmatpush1.msra.mxu0 0.0
        %1761 = vmatprep.subr.mxu0 0.0
        %1762 = vmatpush1.msra.mxu0 0.0
        %1763 = vmatprep.subr.mxu0 0.0
        %1764 = vmatpush1.msra.mxu0 0.0
        %1765 = vmatprep.subr.mxu0 0.0
        %1766 = vmatpush1.msra.mxu0 0.0
        %1767 = vmatprep.subr.mxu0 0.0
        %1768 = vmatpush1.msra.mxu0 0.0
        %1769 = vmatprep.subr.mxu0 0.0
        %1770 = vmatpush1.msra.mxu0 0.0
        %1771 = vmatprep.subr.mxu0 0.0
        %1772 = vmatpush1.msra.mxu0 0.0
        %1773 = vmatprep.subr.mxu0 0.0
        %1774 = vmatpush1.msra.mxu0 0.0
        %1775 = vmatprep.subr.mxu0 0.0
        %1776 = vmatpush1.msra.mxu0 0.0
        %1777 = vmatprep.subr.mxu0 0.0
        %1778 = vmatpush1.msra.mxu0 0.0
        %1779 = vmatprep.subr.mxu0 0.0
        %1780 = vmatpush1.msra.mxu0 0.0
        %1781 = vmatprep.subr.mxu0 0.0
        %1782 = vmatpush1.msra.mxu0 0.0
        %1783 = vmatprep.subr.mxu0 0.0
        %1784 = vmatpush1.msra.mxu0 0.0
        %1785 = vmatprep.subr.mxu0 0.0
        %1786 = vmatpush1.msra.mxu0 0.0
        %1787 = vmatprep.subr.mxu0 0.0
        %1788 = vmatpush1.msra.mxu0 0.0
        %1789 = vmatprep.subr.mxu0 0.0
        %1790 = vmatpush1.msra.mxu0 0.0
        %1791 = vmatprep.subr.mxu0 0.0
        %1792 = vmatpush1.msra.mxu0 0.0
        %1793 = vmatprep.subr.mxu0 0.0
        %1794 = vmatpush1.msra.mxu0 0.0
        %1795 = vmatprep.subr.mxu0 0.0
        %1796 = vmatpush1.msra.mxu0 0.0
        %1797 = vmatprep.subr.mxu0 0.0
        %1798 = vmatpush1.msra.mxu0 0.0
        %1799 = vmatprep.subr.mxu0 0.0
        %1800 = vmatpush1.msra.mxu0 0.0
        %1801 = vmatprep.subr.mxu0 0.0
        %1802 = vmatpush1.msra.mxu0 0.0
        %1803 = vmatprep.subr.mxu0 0.0
        %1804 = vmatpush1.msra.mxu0 0.0
        %1805 = vmatprep.subr.mxu0 0.0
        %1806 = vmatpush1.msra.mxu0 0.0
        %1807 = vmatprep.subr.mxu0 0.0
        %1808 = vmatpush1.msra.mxu0 0.0
        %1809 = vmatprep.subr.mxu0 0.0
        %1810 = vmatpush1.msra.mxu0 0.0
        %1811 = vmatprep.mubr.f32.mxu0 0.0
        %1812 = vmatmul.mubr.f32.gmra.mrb[0].mxu0 %v1745
        %v1813 = vpop.f32.mrb[0].mxu0
        %v1814 = vadd.f32 0.0, %v1813
        %v1815 = vpop.f32.mrb[0].mxu0
        %1816 = vdwg.mxu0
        %v1818 = vsel %vm1318, %v1644, 0
        %1820 = vmatprep.subr.mxu0 0.0
        %1821 = vmatpush1.msra.mxu0 %v1307
        %1822 = vmatprep.subr.mxu0 0.0
        %1823 = vmatpush1.msra.mxu0 0.0
        %1824 = vmatprep.subr.mxu0 0.0
        %1825 = vmatpush1.msra.mxu0 0.0
        %1826 = vmatprep.subr.mxu0 0.0
        %1827 = vmatpush1.msra.mxu0 0.0
        %1828 = vmatprep.subr.mxu0 0.0
        %1829 = vmatpush1.msra.mxu0 0.0
        %1830 = vmatprep.subr.mxu0 0.0
        %1831 = vmatpush1.msra.mxu0 0.0
        %1832 = vmatprep.subr.mxu0 0.0
        %1833 = vmatpush1.msra.mxu0 0.0
        %1834 = vmatprep.subr.mxu0 0.0
        %1835 = vmatpush1.msra.mxu0 0.0
        %1836 = vmatprep.subr.mxu0 0.0
        %1837 = vmatpush1.msra.mxu0 0.0
        %1838 = vmatprep.subr.mxu0 0.0
        %1839 = vmatpush1.msra.mxu0 0.0
        %1840 = vmatprep.subr.mxu0 0.0
        %1841 = vmatpush1.msra.mxu0 0.0
        %1842 = vmatprep.subr.mxu0 0.0
        %1843 = vmatpush1.msra.mxu0 0.0
        %1844 = vmatprep.subr.mxu0 0.0
        %1845 = vmatpush1.msra.mxu0 0.0
        %1846 = vmatprep.subr.mxu0 0.0
        %1847 = vmatpush1.msra.mxu0 0.0
        %1848 = vmatprep.subr.mxu0 0.0
        %1849 = vmatpush1.msra.mxu0 0.0
        %1850 = vmatprep.subr.mxu0 0.0
        %1851 = vmatpush1.msra.mxu0 0.0
        %1852 = vmatprep.subr.mxu0 0.0
        %1853 = vmatpush1.msra.mxu0 0.0
        %1854 = vmatprep.subr.mxu0 0.0
        %1855 = vmatpush1.msra.mxu0 0.0
        %1856 = vmatprep.subr.mxu0 0.0
        %1857 = vmatpush1.msra.mxu0 0.0
        %1858 = vmatprep.subr.mxu0 0.0
        %1859 = vmatpush1.msra.mxu0 0.0
        %1860 = vmatprep.subr.mxu0 0.0
        %1861 = vmatpush1.msra.mxu0 0.0
        %1862 = vmatprep.subr.mxu0 0.0
        %1863 = vmatpush1.msra.mxu0 0.0
        %1864 = vmatprep.subr.mxu0 0.0
        %1865 = vmatpush1.msra.mxu0 0.0
        %1866 = vmatprep.subr.mxu0 0.0
        %1867 = vmatpush1.msra.mxu0 0.0
        %1868 = vmatprep.subr.mxu0 0.0
        %1869 = vmatpush1.msra.mxu0 0.0
        %1870 = vmatprep.subr.mxu0 0.0
        %1871 = vmatpush1.msra.mxu0 0.0
        %1872 = vmatprep.subr.mxu0 0.0
        %1873 = vmatpush1.msra.mxu0 0.0
        %1874 = vmatprep.subr.mxu0 0.0
        %1875 = vmatpush1.msra.mxu0 0.0
        %1876 = vmatprep.subr.mxu0 0.0
        %1877 = vmatpush1.msra.mxu0 0.0
        %1878 = vmatprep.subr.mxu0 0.0
        %1879 = vmatpush1.msra.mxu0 0.0
        %1880 = vmatprep.subr.mxu0 0.0
        %1881 = vmatpush1.msra.mxu0 0.0
        %1882 = vmatprep.subr.mxu0 0.0
        %1883 = vmatpush1.msra.mxu0 0.0
        %1884 = vmatprep.mubr.f32.mxu0 0.0
        %1885 = vmatmul.mubr.f32.gmra.mrb[0].mxu0 %v1818
        %v1886 = vpop.f32.mrb[0].mxu0
        %v1887 = vadd.f32 0.0, %v1886
        %v1888 = vpop.f32.mrb[0].mxu0
        %1889 = vdwg.mxu0
        %v1891 = vsel %vm1318, %v1646, 0
        %1893 = vmatprep.subr.mxu0 0.0
        %1894 = vmatpush1.msra.mxu0 %v1308
        %1895 = vmatprep.subr.mxu0 0.0
        %1896 = vmatpush1.msra.mxu0 0.0
        %1897 = vmatprep.subr.mxu0 0.0
        %1898 = vmatpush1.msra.mxu0 0.0
        %1899 = vmatprep.subr.mxu0 0.0
        %1900 = vmatpush1.msra.mxu0 0.0
        %1901 = vmatprep.subr.mxu0 0.0
        %1902 = vmatpush1.msra.mxu0 0.0
        %1903 = vmatprep.subr.mxu0 0.0
        %1904 = vmatpush1.msra.mxu0 0.0
        %1905 = vmatprep.subr.mxu0 0.0
        %1906 = vmatpush1.msra.mxu0 0.0
        %1907 = vmatprep.subr.mxu0 0.0
        %1908 = vmatpush1.msra.mxu0 0.0
        %1909 = vmatprep.subr.mxu0 0.0
        %1910 = vmatpush1.msra.mxu0 0.0
        %1911 = vmatprep.subr.mxu0 0.0
        %1912 = vmatpush1.msra.mxu0 0.0
        %1913 = vmatprep.subr.mxu0 0.0
        %1914 = vmatpush1.msra.mxu0 0.0
        %1915 = vmatprep.subr.mxu0 0.0
        %1916 = vmatpush1.msra.mxu0 0.0
        %1917 = vmatprep.subr.mxu0 0.0
        %1918 = vmatpush1.msra.mxu0 0.0
        %1919 = vmatprep.subr.mxu0 0.0
        %1920 = vmatpush1.msra.mxu0 0.0
        %1921 = vmatprep.subr.mxu0 0.0
        %1922 = vmatpush1.msra.mxu0 0.0
        %1923 = vmatprep.subr.mxu0 0.0
        %1924 = vmatpush1.msra.mxu0 0.0
        %1925 = vmatprep.subr.mxu0 0.0
        %1926 = vmatpush1.msra.mxu0 0.0
        %1927 = vmatprep.subr.mxu0 0.0
        %1928 = vmatpush1.msra.mxu0 0.0
        %1929 = vmatprep.subr.mxu0 0.0
        %1930 = vmatpush1.msra.mxu0 0.0
        %1931 = vmatprep.subr.mxu0 0.0
        %1932 = vmatpush1.msra.mxu0 0.0
        %1933 = vmatprep.subr.mxu0 0.0
        %1934 = vmatpush1.msra.mxu0 0.0
        %1935 = vmatprep.subr.mxu0 0.0
        %1936 = vmatpush1.msra.mxu0 0.0
        %1937 = vmatprep.subr.mxu0 0.0
        %1938 = vmatpush1.msra.mxu0 0.0
        %1939 = vmatprep.subr.mxu0 0.0
        %1940 = vmatpush1.msra.mxu0 0.0
        %1941 = vmatprep.subr.mxu0 0.0
        %1942 = vmatpush1.msra.mxu0 0.0
        %1943 = vmatprep.subr.mxu0 0.0
        %1944 = vmatpush1.msra.mxu0 0.0
        %1945 = vmatprep.subr.mxu0 0.0
        %1946 = vmatpush1.msra.mxu0 0.0
        %1947 = vmatprep.subr.mxu0 0.0
        %1948 = vmatpush1.msra.mxu0 0.0
        %1949 = vmatprep.subr.mxu0 0.0
        %1950 = vmatpush1.msra.mxu0 0.0
        %1951 = vmatprep.subr.mxu0 0.0
        %1952 = vmatpush1.msra.mxu0 0.0
        %1953 = vmatprep.subr.mxu0 0.0
        %1954 = vmatpush1.msra.mxu0 0.0
        %1955 = vmatprep.subr.mxu0 0.0
        %1956 = vmatpush1.msra.mxu0 0.0
        %1957 = vmatprep.mubr.f32.mxu0 0.0
        %1958 = vmatmul.mubr.f32.gmra.mrb[0].mxu0 %v1891
        %v1959 = vpop.f32.mrb[0].mxu0
        %v1960 = vadd.f32 0.0, %v1959
        %v1961 = vpop.f32.mrb[0].mxu0
        %1962 = vdwg.mxu0
        %v1963 = vmul.f32 %v1741, %v1659
        %v1964 = vmul.f32 %v1814, %v1660
        %v1965 = vmul.f32 %v1887, %v1661
        %v1966 = vmul.f32 %v1960, %v1662
        %v1967 = vcombine.low %v1963, %v1965
        %v1968 = vcombine.high %v1963, %v1965
        %v1970 = vunpack.c.l.s4 1983009808
        %v1971 = vunpack.c.0.s8 %v1970
        %v1972 = vlaneseq
        %v1973 = vshrl.u32 %v1972, 7
        %v1974 = vsub.s32 %v1971, %v1973
        %v1975 = vrot.slane %v1967, %v1974
        %v1977 = vunpack.c.l.s4 1983009808
        %v1978 = vunpack.c.0.s8 %v1977
        %v1979 = vlaneseq
        %v1980 = vshrl.u32 %v1979, 7
        %v1981 = vsub.s32 %v1978, %v1980
        %v1982 = vrot.slane %v1968, %v1981
        %v1983 = vcombine.low %v1964, %v1966
        %v1984 = vcombine.high %v1964, %v1966
        %v1986 = vunpack.c.l.s4 1983009808
        %v1987 = vunpack.c.0.s8 %v1986
        %v1988 = vlaneseq
        %v1989 = vshrl.u32 %v1988, 7
        %v1990 = vsub.s32 %v1987, %v1989
        %v1991 = vrot.slane %v1983, %v1990
        %v1993 = vunpack.c.l.s4 1983009808
        %v1994 = vunpack.c.0.s8 %v1993
        %v1995 = vlaneseq
        %v1996 = vshrl.u32 %v1995, 7
        %v1997 = vsub.s32 %v1994, %v1996
        %v1998 = vrot.slane %v1984, %v1997
        %v1999 = vcombine.low %v1975, %v1991
        %v2000 = vcombine.high %v1975, %v1991
        %v2002 = vunpack.c.l.s4 1934713408
        %v2003 = vunpack.c.0.s8 %v2002
        %v2004 = vlaneseq
        %v2005 = vshrl.u32 %v2004, 7
        %v2006 = vsub.s32 %v2003, %v2005
        %v2007 = vrot.slane %v1999, %v2006
        %v2009 = vunpack.c.l.s4 1934713408
        %v2010 = vunpack.c.0.s8 %v2009
        %v2011 = vlaneseq
        %v2012 = vshrl.u32 %v2011, 7
        %v2013 = vsub.s32 %v2010, %v2012
        %v2014 = vrot.slane %v2000, %v2013
        %v2015 = vcombine.low %v1982, %v1998
        %v2016 = vcombine.high %v1982, %v1998
        %v2018 = vunpack.c.l.s4 1934713408
        %v2019 = vunpack.c.0.s8 %v2018
        %v2020 = vlaneseq
        %v2021 = vshrl.u32 %v2020, 7
        %v2022 = vsub.s32 %v2019, %v2021
        %v2023 = vrot.slane %v2015, %v2022
        %v2025 = vunpack.c.l.s4 1934713408
        %v2026 = vunpack.c.0.s8 %v2025
        %v2027 = vlaneseq
        %v2028 = vshrl.u32 %v2027, 7
        %v2029 = vsub.s32 %v2026, %v2028
        %v2030 = vrot.slane %v2016, %v2029
        %v2031 = vcombine.high %v2007, 0.0
        %v2032 = vcombine.high %v2014, 0.0
        %v2033 = vcombine.high %v2023, 0.0
        %v2034 = vcombine.high %v2030, 0.0
        %v2035 = vcombine.low %v2007, %v2014
        %v2037 = vunpack.c.l.s4 1983009808
        %v2038 = vunpack.c.0.s8 %v2037
        %v2039 = vlaneseq
        %v2040 = vshrl.u32 %v2039, 7
        %v2041 = vsub.s32 %v2038, %v2040
        %v2042 = vrot.slane %v2035, %v2041
        %v2043 = vcombine.low %v2031, %v2032
        %v2045 = vunpack.c.l.s4 1983009808
        %v2046 = vunpack.c.0.s8 %v2045
        %v2047 = vlaneseq
        %v2048 = vshrl.u32 %v2047, 7
        %v2049 = vsub.s32 %v2046, %v2048
        %v2050 = vrot.slane %v2043, %v2049
        %v2051 = vcombine.low %v2023, %v2030
        %v2053 = vunpack.c.l.s4 1983009808
        %v2054 = vunpack.c.0.s8 %v2053
        %v2055 = vlaneseq
        %v2056 = vshrl.u32 %v2055, 7
        %v2057 = vsub.s32 %v2054, %v2056
        %v2058 = vrot.slane %v2051, %v2057
        %v2059 = vcombine.low %v2033, %v2034
        %v2061 = vunpack.c.l.s4 1983009808
        %v2062 = vunpack.c.0.s8 %v2061
        %v2063 = vlaneseq
        %v2064 = vshrl.u32 %v2063, 7
        %v2065 = vsub.s32 %v2062, %v2064
        %v2066 = vrot.slane %v2059, %v2065
        %v2067 = vcombine.low %v2042, %v2050
        %v2068 = vcombine.high %v2042, %v2050
        %v2070 = vunpack.c.l.s4 1934713408
        %v2071 = vunpack.c.0.s8 %v2070
        %v2072 = vlaneseq
        %v2073 = vshrl.u32 %v2072, 7
        %v2074 = vsub.s32 %v2071, %v2073
        %v2075 = vrot.slane %v2067, %v2074
        %v2077 = vunpack.c.l.s4 1934713408
        %v2078 = vunpack.c.0.s8 %v2077
        %v2079 = vlaneseq
        %v2080 = vshrl.u32 %v2079, 7
        %v2081 = vsub.s32 %v2078, %v2080
        %v2082 = vrot.slane %v2068, %v2081
        %v2083 = vcombine.low %v2058, %v2066
        %v2084 = vcombine.high %v2058, %v2066
        %v2086 = vunpack.c.l.s4 1934713408
        %v2087 = vunpack.c.0.s8 %v2086
        %v2088 = vlaneseq
        %v2089 = vshrl.u32 %v2088, 7
        %v2090 = vsub.s32 %v2087, %v2089
        %v2091 = vrot.slane %v2083, %v2090
        %v2093 = vunpack.c.l.s4 1934713408
        %v2094 = vunpack.c.0.s8 %v2093
        %v2095 = vlaneseq
        %v2096 = vshrl.u32 %v2095, 7
        %v2097 = vsub.s32 %v2094, %v2096
        %v2098 = vrot.slane %v2084, %v2097
        %v2099 = vcombine.low %v2075, %v2091
        %v2100 = vcombine.high %v2075, %v2091
        %v2101 = vcombine.low %v2082, %v2098
        %v2102 = vcombine.high %v2082, %v2098
        %2104 = vrot.lane.b32.xlu0 %v2100, 8
        %v2105 = vpop.permute.xlu0 %2104
        %2108 = vrot.lane.b32.xlu0 %v2101, 16
        %v2109 = vpop.permute.xlu0 %2108
        %2112 = vrot.lane.b32.xlu0 %v2102, 24
        %v2113 = vpop.permute.xlu0 %2112
        %v2115 = vsel %vm1318, %v2099, %v2105
        %vm2116 = vcmask 130048
        %v2117 = vsel %vm2116, %v2115, %v2109
        %vm2118 = vcmask 195584
        %v2119 = vsel %vm2118, %v2117, %v2113
        %v2120 = vld [vmem:[%s10] sm:$0xff]
        %v2121 = vld [vmem:[%s10 + $0x8] sm:$0xff]
        %v2122 = vld [vmem:[%s10 + $0x10] sm:$0xff]
        %v2123 = vld [vmem:[%s10 + $0x18] sm:$0xff]
        %v2124 = vld [vmem:[%s11] sm:$0x1]
        %v2126 = vlaneseq
        %v2127 = vshrl.u32 %v2126, 7
        %v2128 = vsub.s32 0, %v2127
        %v2129 = vrot.slane %v2124, %v2128
        %v2132 = vsel %vm629, %v2119, 0
        %2134 = vmatprep.subr.mxu0 0.0
        %2135 = vmatpush1.msra.mxu0 %v2120
        %2136 = vmatprep.subr.mxu0 0.0
        %2137 = vmatpush1.msra.mxu0 %v2121
        %2138 = vmatprep.subr.mxu0 0.0
        %2139 = vmatpush1.msra.mxu0 %v2122
        %2140 = vmatprep.subr.mxu0 0.0
        %2141 = vmatpush1.msra.mxu0 %v2123
        %2142 = vmatprep.subr.mxu0 0.0
        %2143 = vmatpush1.msra.mxu0 0.0
        %2144 = vmatprep.subr.mxu0 0.0
        %2145 = vmatpush1.msra.mxu0 0.0
        %2146 = vmatprep.subr.mxu0 0.0
        %2147 = vmatpush1.msra.mxu0 0.0
        %2148 = vmatprep.subr.mxu0 0.0
        %2149 = vmatpush1.msra.mxu0 0.0
        %2150 = vmatprep.subr.mxu0 0.0
        %2151 = vmatpush1.msra.mxu0 0.0
        %2152 = vmatprep.subr.mxu0 0.0
        %2153 = vmatpush1.msra.mxu0 0.0
        %2154 = vmatprep.subr.mxu0 0.0
        %2155 = vmatpush1.msra.mxu0 0.0
        %2156 = vmatprep.subr.mxu0 0.0
        %2157 = vmatpush1.msra.mxu0 0.0
        %2158 = vmatprep.subr.mxu0 0.0
        %2159 = vmatpush1.msra.mxu0 0.0
        %2160 = vmatprep.subr.mxu0 0.0
        %2161 = vmatpush1.msra.mxu0 0.0
        %2162 = vmatprep.subr.mxu0 0.0
        %2163 = vmatpush1.msra.mxu0 0.0
        %2164 = vmatprep.subr.mxu0 0.0
        %2165 = vmatpush1.msra.mxu0 0.0
        %2166 = vmatprep.subr.mxu0 0.0
        %2167 = vmatpush1.msra.mxu0 0.0
        %2168 = vmatprep.subr.mxu0 0.0
        %2169 = vmatpush1.msra.mxu0 0.0
        %2170 = vmatprep.subr.mxu0 0.0
        %2171 = vmatpush1.msra.mxu0 0.0
        %2172 = vmatprep.subr.mxu0 0.0
        %2173 = vmatpush1.msra.mxu0 0.0
        %2174 = vmatprep.subr.mxu0 0.0
        %2175 = vmatpush1.msra.mxu0 0.0
        %2176 = vmatprep.subr.mxu0 0.0
        %2177 = vmatpush1.msra.mxu0 0.0
        %2178 = vmatprep.subr.mxu0 0.0
        %2179 = vmatpush1.msra.mxu0 0.0
        %2180 = vmatprep.subr.mxu0 0.0
        %2181 = vmatpush1.msra.mxu0 0.0
        %2182 = vmatprep.subr.mxu0 0.0
        %2183 = vmatpush1.msra.mxu0 0.0
        %2184 = vmatprep.subr.mxu0 0.0
        %2185 = vmatpush1.msra.mxu0 0.0
        %2186 = vmatprep.subr.mxu0 0.0
        %2187 = vmatpush1.msra.mxu0 0.0
        %2188 = vmatprep.subr.mxu0 0.0
        %2189 = vmatpush1.msra.mxu0 0.0
        %2190 = vmatprep.subr.mxu0 0.0
        %2191 = vmatpush1.msra.mxu0 0.0
        %2192 = vmatprep.subr.mxu0 0.0
        %2193 = vmatpush1.msra.mxu0 0.0
        %2194 = vmatprep.subr.mxu0 0.0
        %2195 = vmatpush1.msra.mxu0 0.0
        %2196 = vmatprep.subr.mxu0 0.0
        %2197 = vmatpush1.msra.mxu0 0.0
        %2198 = vmatprep.mubr.f32.mxu0 0.0
        %2199 = vmatmul.mubr.f32.gmra.mrb[0].mxu0 %v2132
        %v2200 = vpop.f32.mrb[0].mxu0
        %v2201 = vadd.f32 %v2129, %v2200
        %v2202 = vpop.f32.mrb[0].mxu0
        %2203 = vdwg.mxu0
        %2204 = vst.msk [vmem:[%s604] sm:$0xff] %vm629, %v2201
        %s2205 = sand.u32 %s335, 1
        %s2206 = scalar_lea.sflag [#allocation4], %s2205
        %s2207 = sand.u32 %s335, 1
        %s2208 = smul.addr %s2207, 8
        %s2209 = scalar_lea.vmem [#allocation13], %s2208
        %s2210 = sand.u32 %s363, 1
        %s2211 = scalar_lea.sflag [#allocation15], %s2210
        %s2212 = sand.u32 %s363, 1
        %s2213 = smul.addr %s2212, 32
        %s2214 = scalar_lea.vmem [#allocation14], %s2213
        // Predicated region
        $region93: #{tpu_custom_call.1} parent=67 // pred_check
          %p2215 = pneg %p345
        $region94: #{tpu_custom_call.1} parent=67 // pred_check_branch
          %2217 = sbr.rel (%p2215) target = $region96
        $region95: #{tpu_custom_call.1} parent=67 // pred_region
          %s2219 = ssub.s32 128, 128
          %2220 = vsyncadd %s2206, %s2219
          %s2221 = sadd.s32 %s44, %s43
          %s2222 = smul.addr %s2221, 128
          %s2223 = scalar_lea.hbm %s12, %s2222
          %s2225 = sshll.u32 %s2209, 4
          %s2226 = int_to_ptr.vmem [resolvable:$true] %s2225
          %2228 = dma.vmem_to_hbm [thread:$0]  %s2226, 128, %s2223, %s2206
        $region96: #{tpu_custom_call.1} parent=67 // pred_fallthru
          _
        // Predicated region
        $region97: #{tpu_custom_call.1} parent=67 // pred_check
          %p2229 = pneg %p373
        $region98: #{tpu_custom_call.1} parent=67 // pred_check_branch
          %2231 = sbr.rel (%p2229) target = $region100
        $region99: #{tpu_custom_call.1} parent=67 // pred_region
          %s2233 = ssub.s32 512, 512
          %2234 = vsyncadd %s2211, %s2233
          %s2235 = smul.addr %s43, 4
          %s2236 = sadd.s32 %s44, %s2235
          %s2237 = smul.addr %s2236, 128
          %s2238 = scalar_lea.hbm %s13, %s2237
          %s2239 = sshll.u32 %s2214, 4
          %s2240 = int_to_ptr.vmem [resolvable:$true] %s2239
          %2245 = dma.vmem_to_hbm [thread:$0]  %s2240, 512, %s2238, %s2211, 128, 128, 8
        $region100: #{tpu_custom_call.1} parent=67 // pred_fallthru
          _
      $region68: #{tpu_custom_call.1} parent=5 // pred_fallthru
        _
      %p2246 = scmp.le.s32.totalorder 2, %s34
      // Predicated region
      $region101: #{tpu_custom_call.1} parent=5 // pred_check
        %p2247 = pneg %p2246
      $region102: #{tpu_custom_call.1} parent=5 // pred_check_branch
        %2249 = sbr.rel (%p2247) target = $region104
      $region103: #{tpu_custom_call.1} parent=5 // pred_region
        %s2250 = ssub.s32 %s34, 2
        // Predicated region
        $region105: #{tpu_custom_call.1} parent=103 // pred_check
          %p2251 = pneg %p351
        $region106: #{tpu_custom_call.1} parent=103 // pred_check_branch
          %2253 = sbr.rel (%p2251) target = $region108
        $region107: #{tpu_custom_call.1} parent=103 // pred_region
          %s2254 = sand.u32 %s336, 1
          %s2255 = scalar_lea.sflag [#allocation4], %s2254
          %s2256 = sand.u32 %s336, 1
          %s2257 = smul.addr %s2256, 8
          %s2258 = scalar_lea.vmem [#allocation13], %s2257
          %2259 = dma.done %s2255, 128
        $region108: #{tpu_custom_call.1} parent=103 // pred_fallthru
          _
        // Predicated region
        $region109: #{tpu_custom_call.1} parent=103 // pred_check
          %p2260 = pneg %p379
        $region110: #{tpu_custom_call.1} parent=103 // pred_check_branch
          %2262 = sbr.rel (%p2260) target = $region112
        $region111: #{tpu_custom_call.1} parent=103 // pred_region
          %s2263 = sand.u32 %s364, 1
          %s2264 = scalar_lea.sflag [#allocation15], %s2263
          %s2265 = sand.u32 %s364, 1
          %s2266 = smul.addr %s2265, 32
          %s2267 = scalar_lea.vmem [#allocation14], %s2266
          %2268 = dma.done %s2264, 512
        $region112: #{tpu_custom_call.1} parent=103 // pred_fallthru
          _
      $region104: #{tpu_custom_call.1} parent=5 // pred_fallthru
        _
    $region6: #{tpu_custom_call.1} parent=1 // loop_footer
      %s38 = sadd.s32 1, %s34
    $region7: #{tpu_custom_call.1} parent=1 // loop_footer_branch
      %33 = sbr.rel target = $region3
    $region8: #{tpu_custom_call.1} parent=1 // loop_exit
      _
    %2269 = vsyncpa [#allocation3], 1
    %s2270 = scalar_lea.sflag [#allocation3], 1
    %2271 = vsyncpa %s2270, 1
    %2272 = vsyncpa [#allocation6], 1
    %s2273 = scalar_lea.sflag [#allocation6], 1
    %2274 = vsyncpa %s2273, 1
    %2275 = vsyncpa [#allocation9], 1
    %2276 = vsyncpa [#allocation12], 1
    %2277 = vsyncpa [#allocation4], 1
    %s2278 = scalar_lea.sflag [#allocation4], 1
    %2279 = vsyncpa %s2278, 1
    %2280 = vsyncpa [#allocation15], 1
    %s2281 = scalar_lea.sflag [#allocation15], 1
    %2282 = vsyncpa %s2281, 1

</llo_original>
